<compile_context>
chip_gen: v6e
topology: v6e:2x2x1
jax: 0.10.0
libtpu: 0.0.40
codegen_flags: <defaults>
</compile_context>

<pallas_src>
import functools

import jax
import jax.numpy as jnp
from jax.experimental import pallas as pl
from jax.experimental.pallas import tpu as pltpu


C_PAD = 128  # lane-dense channel width (>= max(n_mel, emb_dim))


# ----------------------------------------------------------------------------
# Fused kernel: 5 x (Conv1d(k=5,pad=2) + folded BN [+ tanh]) on one time tile.
# ----------------------------------------------------------------------------
def _postnet_kernel(x_ref, w_ref, s_ref, o_ref, buf_a, buf_b, *,
                    tile_t, seq_len, ksize, n_layers, pad):
    # x_ref : (S0, C_PAD)          bf16  halo'd input slab, S0 = tile_t+2*L*pad
    # w_ref : (L, K*C_PAD, C_PAD)  bf16  BN-folded, tap-fused weights
    # s_ref : (L, 1, C_PAD)        f32   folded conv-bias + BN shift
    # o_ref : (tile_t, C_PAD)      f32   output tile
    # buf_a/buf_b : (S0, C_PAD)    bf16  ping-pong activation scratch
    s0 = tile_t + 2 * n_layers * pad
    t = pl.program_id(1)
    g0 = t * tile_t - n_layers * pad          # global time index of slab row 0
    bufs = (buf_a, buf_b)

    for l in range(n_layers):                 # static unroll: 5 layers
        src = x_ref if l == 0 else bufs[(l - 1) % 2]
        n_out = s0 - 2 * (l + 1) * pad        # valid rows shrink by pad/side
        off = l * pad
        # Tap fusion: K shifted ref-sliced views concatenated along channels
        # -> one (n_out, K*128) @ (K*128, 128) MXU matmul per layer.
        lhs = jnp.concatenate(
            [src[pl.ds(off + k, n_out), :] for k in range(ksize)], axis=1)
        acc = jnp.dot(lhs, w_ref[l], preferred_element_type=jnp.float32)
        acc = acc + s_ref[l]                   # folded bias + BN shift

        if l < n_layers - 1:
            h = jnp.tanh(acc)                  # f32 tanh (v5e-safe)
            # Halo rows outside the real sequence [0, seq_len) must be zero
            # for the next layer: they are Conv1d's zero padding.
            g = g0 + (l + 1) * pad + jax.lax.broadcasted_iota(
                jnp.int32, (n_out, 1), 0)
            h = h * ((g >= 0) & (g < seq_len)).astype(h.dtype)
            bufs[l % 2][pl.ds((l + 1) * pad, n_out), :] = h.astype(jnp.bfloat16)
        else:
            # Last layer: no tanh (matches PyTorch PostNet); rows map 1:1 to
            # the output tile, all inside [0, seq_len).
            o_ref[...] = acc.astype(o_ref.dtype)


def _pick_tile_t(T):
    for cand in (256, 128, 64, 32, 16, 8):
        if T % cand == 0:
            return cand
    return T


def postnet_forward(x, w_all, s_all, *, n_mel, tile_t=None):
    """x: (B, T, n_mel) f32 -> (B, T, n_mel) f32 (eval-mode PostNet)."""
    B, T, _ = x.shape
    L, KC, c_pad = w_all.shape
    K = KC // c_pad
    pad = (K - 1) // 2
    halo = L * pad
    if tile_t is None:
        tile_t = _pick_tile_t(T)
    nt = T // tile_t
    s0 = tile_t + 2 * halo

    # Single fused pad/cast/unfold pass: bf16 cast, zero time halo of `halo`
    # rows each side, channels lane-padded to 128, and each tile's halo'd
    # window laid out contiguously so plain BlockSpecs (auto double-buffered
    # DMA) can deliver overlapping windows without manual DMA.
    x_p = jnp.zeros((B, T + 2 * halo, c_pad), jnp.bfloat16)
    x_p = x_p.at[:, halo:halo + T, :n_mel].set(x.astype(jnp.bfloat16))
    idx = (jnp.arange(nt) * tile_t)[:, None] + jnp.arange(s0)[None, :]
    x_unf = jnp.take(x_p, idx, axis=1)          # (B, nt, s0, c_pad)

    kernel = functools.partial(_postnet_kernel, tile_t=tile_t, seq_len=T,
                               ksize=K, n_layers=L, pad=pad)

    out = pl.pallas_call(
        kernel,
        out_shape=jax.ShapeDtypeStruct((B, T, c_pad), jnp.float32),
        grid=(B, nt),
        in_specs=[
            pl.BlockSpec((None, None, s0, c_pad), lambda b, t: (b, t, 0, 0)),
            pl.BlockSpec((L, KC, c_pad), lambda b, t: (0, 0, 0)),      # weights
            pl.BlockSpec((L, 1, c_pad), lambda b, t: (0, 0, 0)),       # shift
        ],
        out_specs=pl.BlockSpec((None, tile_t, c_pad), lambda b, t: (b, t, 0)),
        scratch_shapes=[
            pltpu.VMEM((s0, c_pad), jnp.bfloat16),
            pltpu.VMEM((s0, c_pad), jnp.bfloat16),
        ],
        compiler_params=pltpu.CompilerParams(
            dimension_semantics=("parallel", "parallel"),
            vmem_limit_bytes=64 * 1024 * 1024),
    )(x_unf, w_all, s_all)

    # Demo convenience: slice valid mel lanes.  In production keep the
    # lane-dense (..., 128) output (and bf16) and fuse the slice downstream.
    return out[:, :, :n_mel]


# ----------------------------------------------------------------------------
# Parameter construction (deterministic, synthetic) + BN/bias folding + pad.
# ----------------------------------------------------------------------------
def make_postnet_params(key, n_mel=16, emb_dim=32, ksize=5, n_convs=5,
                        dtype=jnp.float32):
    eps = 1e-5  # BatchNorm1d default
    params = []
    in_ch = n_mel
    for i in range(n_convs):
        out_ch = emb_dim if i < n_convs - 1 else n_mel
        key, kw, kb, kg, kbe, km, kv = jax.random.split(key, 7)
        # PyTorch Conv1d weight layout (Cout, Cin, K) -> (K, Cin, Cout).
        w = 0.05 * jax.random.normal(kw, (out_ch, in_ch, ksize), dtype)
        w = jnp.transpose(w, (2, 1, 0))
        b = 0.05 * jax.random.normal(kb, (out_ch,), dtype)
        gamma = 1.0 + 0.1 * jax.random.normal(kg, (out_ch,), dtype)
        beta = 0.1 * jax.random.normal(kbe, (out_ch,), dtype)
        run_mean = 0.1 * jax.random.normal(km, (out_ch,), dtype)
        run_var = 1.0 + 0.1 * jnp.abs(jax.random.normal(kv, (out_ch,), dtype))
        scale = gamma / jnp.sqrt(run_var + eps)      # eval-mode BN fold
        shift = beta - run_mean * scale
        params.append(dict(w=w, b=b, scale=scale, shift=shift))
        in_ch = out_ch
    return params


def fold_and_pad_params(params, c_pad):
    """Fold BN scale into weights and conv bias into the shift, pad channels
    to c_pad, fuse the K taps into the contraction dim, cast to bf16."""
    ws, shifts = [], []
    for p in params:
        w = p["w"]                                   # (K, Cin, Cout)
        K, cin, cout = w.shape
        w_f = w * p["scale"][None, None, :]          # BN scale folded in
        s_f = p["b"] * p["scale"] + p["shift"]       # bias + BN shift folded
        w_pad = jnp.zeros((K, c_pad, c_pad), jnp.float32)
        w_pad = w_pad.at[:, :cin, :cout].set(w_f)
        ws.append(w_pad.reshape(K * c_pad, c_pad))   # tap-fused layout
        shifts.append(jnp.zeros((c_pad,), jnp.float32).at[:cout].set(s_f))
    w_all = jnp.stack(ws).astype(jnp.bfloat16)       # (L, K*C_PAD, C_PAD)
    s_all = jnp.stack(shifts)[:, None, :]            # (L, 1, C_PAD) f32
    return w_all, s_all


# ----------------------------------------------------------------------------
# Pure-JAX f32 reference (same eval-mode math) for a correctness check.
# ----------------------------------------------------------------------------
def postnet_reference(x, params):
    h = x
    n = len(params)
    for i, p in enumerate(params):
        K = p["w"].shape[0]
        pad = (K - 1) // 2
        T = h.shape[1]
        hp = jnp.pad(h, ((0, 0), (pad, pad), (0, 0)))
        out = sum(jnp.einsum("btc,cd->btd", hp[:, k:k + T, :], p["w"][k])
                  for k in range(K))
        out = (out + p["b"]) * p["scale"] + p["shift"]
        if i < n - 1:
            out = jnp.tanh(out)
        h = out
    return h


if __name__ == "__main__":
    key = jax.random.PRNGKey(0)
    k_in, k_par = jax.random.split(key)

    B, T, N_MEL, EMB, K, N_CONVS = 2, 8, 16, 32, 5, 5
    x = jax.random.normal(k_in, (B, T, N_MEL), jnp.float32)
    params = make_postnet_params(k_par, n_mel=N_MEL, emb_dim=EMB,
                                 ksize=K, n_convs=N_CONVS)
    w_all, s_all = fold_and_pad_params(params, C_PAD)

    out = postnet_forward(x, w_all, s_all, n_mel=N_MEL)
    out = jax.block_until_ready(out)

    assert out.shape == (B, T, N_MEL), out.shape
    assert jnp.all(jnp.isfinite(out))
    ref = postnet_reference(x, params)
    assert jnp.allclose(out, ref, atol=5e-2, rtol=5e-2), \
        float(jnp.max(jnp.abs(out - ref)))
    print("KERNEL_OK")
</pallas_src>

<mosaic_0001>
module attributes {stable_mosaic.version = 11 : i64} {
  func.func @_postnet_kernel(%arg0: i32, %arg1: i32, %arg2: memref<1x1x28x128xbf16, #tpu.memory_space<vmem>>, %arg3: memref<5x640x128xbf16, #tpu.memory_space<vmem>>, %arg4: memref<5x1x128xf32, #tpu.memory_space<vmem>>, %arg5: memref<1x8x128xf32, #tpu.memory_space<vmem>>, %arg6: memref<28x128xbf16, #tpu.memory_space<vmem>>, %arg7: memref<28x128xbf16, #tpu.memory_space<vmem>>) attributes {dimension_semantics = [#tpu.dimension_semantics<parallel>, #tpu.dimension_semantics<parallel>], iteration_bounds = array<i64: 2, 1>, scalar_prefetch = 0 : i64, scratch_operands = 2 : i64, tpu.core_type = #tpu.core_type<tc>, window_params = [{transform_indices = @transform_0, window_bounds = array<i64: 1, 1, 28, 128>}, {pipeline_mode = #tpu.pipeline_mode<synchronous>, transform_indices = @transform_1, window_bounds = array<i64: 5, 640, 128>}, {pipeline_mode = #tpu.pipeline_mode<synchronous>, transform_indices = @transform_2, window_bounds = array<i64: 5, 1, 128>}, {transform_indices = @transform_3, window_bounds = array<i64: 1, 8, 128>}]} {
    %c8_i32 = arith.constant 8 : i32
    %0 = arith.muli %arg1, %c8_i32 : i32
    %c10_i32 = arith.constant 10 : i32
    %1 = arith.subi %0, %c10_i32 : i32
    %c0 = arith.constant 0 : index
    %c0_0 = arith.constant 0 : index
    %c0_1 = arith.constant 0 : index
    %c0_2 = arith.constant 0 : index
    %2 = vector.load %arg2[%c0, %c0_0, %c0_1, %c0_2] : memref<1x1x28x128xbf16, #tpu.memory_space<vmem>>, vector<1x1x24x128xbf16>
    %3 = vector.shape_cast %2 : vector<1x1x24x128xbf16> to vector<24x128xbf16>
    %c0_3 = arith.constant 0 : index
    %c0_4 = arith.constant 0 : index
    %c1 = arith.constant 1 : index
    %c0_5 = arith.constant 0 : index
    %4 = vector.load %arg2[%c0_3, %c0_4, %c1, %c0_5] : memref<1x1x28x128xbf16, #tpu.memory_space<vmem>>, vector<1x1x24x128xbf16>
    %5 = vector.shape_cast %4 : vector<1x1x24x128xbf16> to vector<24x128xbf16>
    %c0_6 = arith.constant 0 : index
    %c0_7 = arith.constant 0 : index
    %c2 = arith.constant 2 : index
    %c0_8 = arith.constant 0 : index
    %6 = vector.load %arg2[%c0_6, %c0_7, %c2, %c0_8] : memref<1x1x28x128xbf16, #tpu.memory_space<vmem>>, vector<1x1x24x128xbf16>
    %7 = vector.shape_cast %6 : vector<1x1x24x128xbf16> to vector<24x128xbf16>
    %c0_9 = arith.constant 0 : index
    %c0_10 = arith.constant 0 : index
    %c3 = arith.constant 3 : index
    %c0_11 = arith.constant 0 : index
    %8 = vector.load %arg2[%c0_9, %c0_10, %c3, %c0_11] : memref<1x1x28x128xbf16, #tpu.memory_space<vmem>>, vector<1x1x24x128xbf16>
    %9 = vector.shape_cast %8 : vector<1x1x24x128xbf16> to vector<24x128xbf16>
    %c0_12 = arith.constant 0 : index
    %c0_13 = arith.constant 0 : index
    %c4 = arith.constant 4 : index
    %c0_14 = arith.constant 0 : index
    %10 = vector.load %arg2[%c0_12, %c0_13, %c4, %c0_14] : memref<1x1x28x128xbf16, #tpu.memory_space<vmem>>, vector<1x1x24x128xbf16>
    %11 = vector.shape_cast %10 : vector<1x1x24x128xbf16> to vector<24x128xbf16>
    %12 = tpu.concatenate %3, %5, %7, %9, %11 in 1 : vector<24x128xbf16>, vector<24x128xbf16>, vector<24x128xbf16>, vector<24x128xbf16>, vector<24x128xbf16> -> vector<24x640xbf16>
    %c0_15 = arith.constant 0 : index
    %c0_16 = arith.constant 0 : index
    %c0_17 = arith.constant 0 : index
    %13 = vector.load %arg3[%c0_15, %c0_16, %c0_17] : memref<5x640x128xbf16, #tpu.memory_space<vmem>>, vector<1x640x128xbf16>
    %14 = vector.shape_cast %13 : vector<1x640x128xbf16> to vector<640x128xbf16>
    %cst = arith.constant dense<0.000000e+00> : vector<24x128xf32>
    %15 = tpu.matmul %12, %14, %cst {dimension_numbers = #tpu.dot_dimension_numbers<[1], [0], [0], [1], [0, 0, 1, 1], [], []>} : vector<24x640xbf16>, vector<640x128xbf16>, vector<24x128xf32> -> vector<24x128xf32>
    %c0_18 = arith.constant 0 : index
    %c0_19 = arith.constant 0 : index
    %c0_20 = arith.constant 0 : index
    %16 = vector.load %arg4[%c0_18, %c0_19, %c0_20] : memref<5x1x128xf32, #tpu.memory_space<vmem>>, vector<1x1x128xf32>
    %17 = vector.shape_cast %16 : vector<1x1x128xf32> to vector<1x128xf32>
    %18 = vector.broadcast %17 : vector<1x128xf32> to vector<24x128xf32>
    %19 = arith.addf %15, %18 : vector<24x128xf32>
    %20 = math.tanh %19 : vector<24x128xf32>
    %c2_i32 = arith.constant 2 : i32
    %21 = arith.addi %1, %c2_i32 : i32
    %22 = tpu.iota {dimensions = array<i32: 0>} : vector<24x1xi32>
    %23 = vector.broadcast %21 : i32 to vector<24x1xi32>
    %24 = arith.addi %23, %22 : vector<24x1xi32>
    %c0_i32 = arith.constant 0 : i32
    %25 = vector.broadcast %c0_i32 : i32 to vector<24x1xi32>
    %26 = arith.cmpi sge, %24, %25 : vector<24x1xi32>
    %c8_i32_21 = arith.constant 8 : i32
    %27 = vector.broadcast %c8_i32_21 : i32 to vector<24x1xi32>
    %28 = arith.cmpi slt, %24, %27 : vector<24x1xi32>
    %29 = arith.andi %26, %28 : vector<24x1xi1>
    %30 = arith.extui %29 : vector<24x1xi1> to vector<24x1xi32>
    %31 = arith.sitofp %30 : vector<24x1xi32> to vector<24x1xf32>
    %32 = vector.broadcast %31 : vector<24x1xf32> to vector<24x128xf32>
    %33 = arith.mulf %20, %32 : vector<24x128xf32>
    %34 = arith.truncf %33 : vector<24x128xf32> to vector<24x128xbf16>
    %c2_22 = arith.constant 2 : index
    %c0_23 = arith.constant 0 : index
    %35 = vector.load %arg6[%c2_22, %c0_23] : memref<28x128xbf16, #tpu.memory_space<vmem>>, vector<24x128xbf16>
    tpu.vector_store %arg6[%c2_22, %c0_23], %34 {strides = array<i32>} : memref<28x128xbf16, #tpu.memory_space<vmem>>, vector<24x128xbf16>,
    %c2_24 = arith.constant 2 : index
    %c0_25 = arith.constant 0 : index
    %36 = vector.load %arg6[%c2_24, %c0_25] : memref<28x128xbf16, #tpu.memory_space<vmem>>, vector<20x128xbf16>
    %c3_26 = arith.constant 3 : index
    %c0_27 = arith.constant 0 : index
    %37 = vector.load %arg6[%c3_26, %c0_27] : memref<28x128xbf16, #tpu.memory_space<vmem>>, vector<20x128xbf16>
    %c4_28 = arith.constant 4 : index
    %c0_29 = arith.constant 0 : index
    %38 = vector.load %arg6[%c4_28, %c0_29] : memref<28x128xbf16, #tpu.memory_space<vmem>>, vector<20x128xbf16>
    %c5 = arith.constant 5 : index
    %c0_30 = arith.constant 0 : index
    %39 = vector.load %arg6[%c5, %c0_30] : memref<28x128xbf16, #tpu.memory_space<vmem>>, vector<20x128xbf16>
    %c6 = arith.constant 6 : index
    %c0_31 = arith.constant 0 : index
    %40 = vector.load %arg6[%c6, %c0_31] : memref<28x128xbf16, #tpu.memory_space<vmem>>, vector<20x128xbf16>
    %41 = tpu.concatenate %36, %37, %38, %39, %40 in 1 : vector<20x128xbf16>, vector<20x128xbf16>, vector<20x128xbf16>, vector<20x128xbf16>, vector<20x128xbf16> -> vector<20x640xbf16>
    %c1_32 = arith.constant 1 : index
    %c0_33 = arith.constant 0 : index
    %c0_34 = arith.constant 0 : index
    %42 = vector.load %arg3[%c1_32, %c0_33, %c0_34] : memref<5x640x128xbf16, #tpu.memory_space<vmem>>, vector<1x640x128xbf16>
    %43 = vector.shape_cast %42 : vector<1x640x128xbf16> to vector<640x128xbf16>
    %cst_35 = arith.constant dense<0.000000e+00> : vector<20x128xf32>
    %44 = tpu.matmul %41, %43, %cst_35 {dimension_numbers = #tpu.dot_dimension_numbers<[1], [0], [0], [1], [0, 0, 1, 1], [], []>} : vector<20x640xbf16>, vector<640x128xbf16>, vector<20x128xf32> -> vector<20x128xf32>
    %c1_36 = arith.constant 1 : index
    %c0_37 = arith.constant 0 : index
    %c0_38 = arith.constant 0 : index
    %45 = vector.load %arg4[%c1_36, %c0_37, %c0_38] : memref<5x1x128xf32, #tpu.memory_space<vmem>>, vector<1x1x128xf32>
    %46 = vector.shape_cast %45 : vector<1x1x128xf32> to vector<1x128xf32>
    %47 = vector.broadcast %46 : vector<1x128xf32> to vector<20x128xf32>
    %48 = arith.addf %44, %47 : vector<20x128xf32>
    %49 = math.tanh %48 : vector<20x128xf32>
    %c4_i32 = arith.constant 4 : i32
    %50 = arith.addi %1, %c4_i32 : i32
    %51 = tpu.iota {dimensions = array<i32: 0>} : vector<20x1xi32>
    %52 = vector.broadcast %50 : i32 to vector<20x1xi32>
    %53 = arith.addi %52, %51 : vector<20x1xi32>
    %c0_i32_39 = arith.constant 0 : i32
    %54 = vector.broadcast %c0_i32_39 : i32 to vector<20x1xi32>
    %55 = arith.cmpi sge, %53, %54 : vector<20x1xi32>
    %c8_i32_40 = arith.constant 8 : i32
    %56 = vector.broadcast %c8_i32_40 : i32 to vector<20x1xi32>
    %57 = arith.cmpi slt, %53, %56 : vector<20x1xi32>
    %58 = arith.andi %55, %57 : vector<20x1xi1>
    %59 = arith.extui %58 : vector<20x1xi1> to vector<20x1xi32>
    %60 = arith.sitofp %59 : vector<20x1xi32> to vector<20x1xf32>
    %61 = vector.broadcast %60 : vector<20x1xf32> to vector<20x128xf32>
    %62 = arith.mulf %49, %61 : vector<20x128xf32>
    %63 = arith.truncf %62 : vector<20x128xf32> to vector<20x128xbf16>
    %c4_41 = arith.constant 4 : index
    %c0_42 = arith.constant 0 : index
    %64 = vector.load %arg7[%c4_41, %c0_42] : memref<28x128xbf16, #tpu.memory_space<vmem>>, vector<20x128xbf16>
    tpu.vector_store %arg7[%c4_41, %c0_42], %63 {strides = array<i32>} : memref<28x128xbf16, #tpu.memory_space<vmem>>, vector<20x128xbf16>,
    %c4_43 = arith.constant 4 : index
    %c0_44 = arith.constant 0 : index
    %65 = vector.load %arg7[%c4_43, %c0_44] : memref<28x128xbf16, #tpu.memory_space<vmem>>, vector<16x128xbf16>
    %c5_45 = arith.constant 5 : index
    %c0_46 = arith.constant 0 : index
    %66 = vector.load %arg7[%c5_45, %c0_46] : memref<28x128xbf16, #tpu.memory_space<vmem>>, vector<16x128xbf16>
    %c6_47 = arith.constant 6 : index
    %c0_48 = arith.constant 0 : index
    %67 = vector.load %arg7[%c6_47, %c0_48] : memref<28x128xbf16, #tpu.memory_space<vmem>>, vector<16x128xbf16>
    %c7 = arith.constant 7 : index
    %c0_49 = arith.constant 0 : index
    %68 = vector.load %arg7[%c7, %c0_49] : memref<28x128xbf16, #tpu.memory_space<vmem>>, vector<16x128xbf16>
    %c8 = arith.constant 8 : index
    %c0_50 = arith.constant 0 : index
    %69 = vector.load %arg7[%c8, %c0_50] : memref<28x128xbf16, #tpu.memory_space<vmem>>, vector<16x128xbf16>
    %70 = tpu.concatenate %65, %66, %67, %68, %69 in 1 : vector<16x128xbf16>, vector<16x128xbf16>, vector<16x128xbf16>, vector<16x128xbf16>, vector<16x128xbf16> -> vector<16x640xbf16>
    %c2_51 = arith.constant 2 : index
    %c0_52 = arith.constant 0 : index
    %c0_53 = arith.constant 0 : index
    %71 = vector.load %arg3[%c2_51, %c0_52, %c0_53] : memref<5x640x128xbf16, #tpu.memory_space<vmem>>, vector<1x640x128xbf16>
    %72 = vector.shape_cast %71 : vector<1x640x128xbf16> to vector<640x128xbf16>
    %cst_54 = arith.constant dense<0.000000e+00> : vector<16x128xf32>
    %73 = tpu.matmul %70, %72, %cst_54 {dimension_numbers = #tpu.dot_dimension_numbers<[1], [0], [0], [1], [0, 0, 1, 1], [], []>} : vector<16x640xbf16>, vector<640x128xbf16>, vector<16x128xf32> -> vector<16x128xf32>
    %c2_55 = arith.constant 2 : index
    %c0_56 = arith.constant 0 : index
    %c0_57 = arith.constant 0 : index
    %74 = vector.load %arg4[%c2_55, %c0_56, %c0_57] : memref<5x1x128xf32, #tpu.memory_space<vmem>>, vector<1x1x128xf32>
    %75 = vector.shape_cast %74 : vector<1x1x128xf32> to vector<1x128xf32>
    %76 = vector.broadcast %75 : vector<1x128xf32> to vector<16x128xf32>
    %77 = arith.addf %73, %76 : vector<16x128xf32>
    %78 = math.tanh %77 : vector<16x128xf32>
    %c6_i32 = arith.constant 6 : i32
    %79 = arith.addi %1, %c6_i32 : i32
    %80 = tpu.iota {dimensions = array<i32: 0>} : vector<16x1xi32>
    %81 = vector.broadcast %79 : i32 to vector<16x1xi32>
    %82 = arith.addi %81, %80 : vector<16x1xi32>
    %c0_i32_58 = arith.constant 0 : i32
    %83 = vector.broadcast %c0_i32_58 : i32 to vector<16x1xi32>
    %84 = arith.cmpi sge, %82, %83 : vector<16x1xi32>
    %c8_i32_59 = arith.constant 8 : i32
    %85 = vector.broadcast %c8_i32_59 : i32 to vector<16x1xi32>
    %86 = arith.cmpi slt, %82, %85 : vector<16x1xi32>
    %87 = arith.andi %84, %86 : vector<16x1xi1>
    %88 = arith.extui %87 : vector<16x1xi1> to vector<16x1xi32>
    %89 = arith.sitofp %88 : vector<16x1xi32> to vector<16x1xf32>
    %90 = vector.broadcast %89 : vector<16x1xf32> to vector<16x128xf32>
    %91 = arith.mulf %78, %90 : vector<16x128xf32>
    %92 = arith.truncf %91 : vector<16x128xf32> to vector<16x128xbf16>
    %c6_60 = arith.constant 6 : index
    %c0_61 = arith.constant 0 : index
    %93 = vector.load %arg6[%c6_60, %c0_61] : memref<28x128xbf16, #tpu.memory_space<vmem>>, vector<16x128xbf16>
    tpu.vector_store %arg6[%c6_60, %c0_61], %92 {strides = array<i32>} : memref<28x128xbf16, #tpu.memory_space<vmem>>, vector<16x128xbf16>,
    %c6_62 = arith.constant 6 : index
    %c0_63 = arith.constant 0 : index
    %94 = vector.load %arg6[%c6_62, %c0_63] : memref<28x128xbf16, #tpu.memory_space<vmem>>, vector<12x128xbf16>
    %c7_64 = arith.constant 7 : index
    %c0_65 = arith.constant 0 : index
    %95 = vector.load %arg6[%c7_64, %c0_65] : memref<28x128xbf16, #tpu.memory_space<vmem>>, vector<12x128xbf16>
    %c8_66 = arith.constant 8 : index
    %c0_67 = arith.constant 0 : index
    %96 = vector.load %arg6[%c8_66, %c0_67] : memref<28x128xbf16, #tpu.memory_space<vmem>>, vector<12x128xbf16>
    %c9 = arith.constant 9 : index
    %c0_68 = arith.constant 0 : index
    %97 = vector.load %arg6[%c9, %c0_68] : memref<28x128xbf16, #tpu.memory_space<vmem>>, vector<12x128xbf16>
    %c10 = arith.constant 10 : index
    %c0_69 = arith.constant 0 : index
    %98 = vector.load %arg6[%c10, %c0_69] : memref<28x128xbf16, #tpu.memory_space<vmem>>, vector<12x128xbf16>
    %99 = tpu.concatenate %94, %95, %96, %97, %98 in 1 : vector<12x128xbf16>, vector<12x128xbf16>, vector<12x128xbf16>, vector<12x128xbf16>, vector<12x128xbf16> -> vector<12x640xbf16>
    %c3_70 = arith.constant 3 : index
    %c0_71 = arith.constant 0 : index
    %c0_72 = arith.constant 0 : index
    %100 = vector.load %arg3[%c3_70, %c0_71, %c0_72] : memref<5x640x128xbf16, #tpu.memory_space<vmem>>, vector<1x640x128xbf16>
    %101 = vector.shape_cast %100 : vector<1x640x128xbf16> to vector<640x128xbf16>
    %cst_73 = arith.constant dense<0.000000e+00> : vector<12x128xf32>
    %102 = tpu.matmul %99, %101, %cst_73 {dimension_numbers = #tpu.dot_dimension_numbers<[1], [0], [0], [1], [0, 0, 1, 1], [], []>} : vector<12x640xbf16>, vector<640x128xbf16>, vector<12x128xf32> -> vector<12x128xf32>
    %c3_74 = arith.constant 3 : index
    %c0_75 = arith.constant 0 : index
    %c0_76 = arith.constant 0 : index
    %103 = vector.load %arg4[%c3_74, %c0_75, %c0_76] : memref<5x1x128xf32, #tpu.memory_space<vmem>>, vector<1x1x128xf32>
    %104 = vector.shape_cast %103 : vector<1x1x128xf32> to vector<1x128xf32>
    %105 = vector.broadcast %104 : vector<1x128xf32> to vector<12x128xf32>
    %106 = arith.addf %102, %105 : vector<12x128xf32>
    %107 = math.tanh %106 : vector<12x128xf32>
    %c8_i32_77 = arith.constant 8 : i32
    %108 = arith.addi %1, %c8_i32_77 : i32
    %109 = tpu.iota {dimensions = array<i32: 0>} : vector<12x1xi32>
    %110 = vector.broadcast %108 : i32 to vector<12x1xi32>
    %111 = arith.addi %110, %109 : vector<12x1xi32>
    %c0_i32_78 = arith.constant 0 : i32
    %112 = vector.broadcast %c0_i32_78 : i32 to vector<12x1xi32>
    %113 = arith.cmpi sge, %111, %112 : vector<12x1xi32>
    %c8_i32_79 = arith.constant 8 : i32
    %114 = vector.broadcast %c8_i32_79 : i32 to vector<12x1xi32>
    %115 = arith.cmpi slt, %111, %114 : vector<12x1xi32>
    %116 = arith.andi %113, %115 : vector<12x1xi1>
    %117 = arith.extui %116 : vector<12x1xi1> to vector<12x1xi32>
    %118 = arith.sitofp %117 : vector<12x1xi32> to vector<12x1xf32>
    %119 = vector.broadcast %118 : vector<12x1xf32> to vector<12x128xf32>
    %120 = arith.mulf %107, %119 : vector<12x128xf32>
    %121 = arith.truncf %120 : vector<12x128xf32> to vector<12x128xbf16>
    %c8_80 = arith.constant 8 : index
    %c0_81 = arith.constant 0 : index
    %122 = vector.load %arg7[%c8_80, %c0_81] : memref<28x128xbf16, #tpu.memory_space<vmem>>, vector<12x128xbf16>
    tpu.vector_store %arg7[%c8_80, %c0_81], %121 {strides = array<i32>} : memref<28x128xbf16, #tpu.memory_space<vmem>>, vector<12x128xbf16>,
    %c8_82 = arith.constant 8 : index
    %c0_83 = arith.constant 0 : index
    %123 = vector.load %arg7[%c8_82, %c0_83] : memref<28x128xbf16, #tpu.memory_space<vmem>>, vector<8x128xbf16>
    %c9_84 = arith.constant 9 : index
    %c0_85 = arith.constant 0 : index
    %124 = vector.load %arg7[%c9_84, %c0_85] : memref<28x128xbf16, #tpu.memory_space<vmem>>, vector<8x128xbf16>
    %c10_86 = arith.constant 10 : index
    %c0_87 = arith.constant 0 : index
    %125 = vector.load %arg7[%c10_86, %c0_87] : memref<28x128xbf16, #tpu.memory_space<vmem>>, vector<8x128xbf16>
    %c11 = arith.constant 11 : index
    %c0_88 = arith.constant 0 : index
    %126 = vector.load %arg7[%c11, %c0_88] : memref<28x128xbf16, #tpu.memory_space<vmem>>, vector<8x128xbf16>
    %c12 = arith.constant 12 : index
    %c0_89 = arith.constant 0 : index
    %127 = vector.load %arg7[%c12, %c0_89] : memref<28x128xbf16, #tpu.memory_space<vmem>>, vector<8x128xbf16>
    %128 = tpu.concatenate %123, %124, %125, %126, %127 in 1 : vector<8x128xbf16>, vector<8x128xbf16>, vector<8x128xbf16>, vector<8x128xbf16>, vector<8x128xbf16> -> vector<8x640xbf16>
    %c4_90 = arith.constant 4 : index
    %c0_91 = arith.constant 0 : index
    %c0_92 = arith.constant 0 : index
    %129 = vector.load %arg3[%c4_90, %c0_91, %c0_92] : memref<5x640x128xbf16, #tpu.memory_space<vmem>>, vector<1x640x128xbf16>
    %130 = vector.shape_cast %129 : vector<1x640x128xbf16> to vector<640x128xbf16>
    %cst_93 = arith.constant dense<0.000000e+00> : vector<8x128xf32>
    %131 = tpu.matmul %128, %130, %cst_93 {dimension_numbers = #tpu.dot_dimension_numbers<[1], [0], [0], [1], [0, 0, 1, 1], [], []>} : vector<8x640xbf16>, vector<640x128xbf16>, vector<8x128xf32> -> vector<8x128xf32>
    %c4_94 = arith.constant 4 : index
    %c0_95 = arith.constant 0 : index
    %c0_96 = arith.constant 0 : index
    %132 = vector.load %arg4[%c4_94, %c0_95, %c0_96] : memref<5x1x128xf32, #tpu.memory_space<vmem>>, vector<1x1x128xf32>
    %133 = vector.shape_cast %132 : vector<1x1x128xf32> to vector<1x128xf32>
    %134 = vector.broadcast %133 : vector<1x128xf32> to vector<8x128xf32>
    %135 = arith.addf %131, %134 : vector<8x128xf32>
    %c0_97 = arith.constant 0 : index
    %c0_98 = arith.constant 0 : index
    %c0_99 = arith.constant 0 : index
    %136 = vector.load %arg5[%c0_97, %c0_98, %c0_99] : memref<1x8x128xf32, #tpu.memory_space<vmem>>, vector<1x8x128xf32>
    %137 = vector.shape_cast %136 : vector<1x8x128xf32> to vector<8x128xf32>
    %138 = vector.shape_cast %135 : vector<8x128xf32> to vector<1x8x128xf32>
    tpu.vector_store %arg5[%c0_97, %c0_98, %c0_99], %138 {strides = array<i32>} : memref<1x8x128xf32, #tpu.memory_space<vmem>>, vector<1x8x128xf32>,
    return
  }
  func.func @transform_0(%arg0: i32, %arg1: i32) -> (i32, i32, i32, i32) {
    %c0_i32 = arith.constant 0 : i32
    %c0_i32_0 = arith.constant 0 : i32
    %c0_i32_1 = arith.constant 0 : i32
    return %arg0, %arg1, %c0_i32, %c0_i32_0 : i32, i32, i32, i32
  }
  func.func @transform_1(%arg0: i32, %arg1: i32) -> (i32, i32, i32) {
    %c0_i32 = arith.constant 0 : i32
    %c0_i32_0 = arith.constant 0 : i32
    %c0_i32_1 = arith.constant 0 : i32
    %c0_i32_2 = arith.constant 0 : i32
    return %c0_i32, %c0_i32_0, %c0_i32_1 : i32, i32, i32
  }
  func.func @transform_2(%arg0: i32, %arg1: i32) -> (i32, i32, i32) {
    %c0_i32 = arith.constant 0 : i32
    %c0_i32_0 = arith.constant 0 : i32
    %c0_i32_1 = arith.constant 0 : i32
    %c0_i32_2 = arith.constant 0 : i32
    return %c0_i32, %c0_i32_0, %c0_i32_1 : i32, i32, i32
  }
  func.func @transform_3(%arg0: i32, %arg1: i32) -> (i32, i32, i32) {
    %c0_i32 = arith.constant 0 : i32
    %c0_i32_0 = arith.constant 0 : i32
    return %arg0, %arg1, %c0_i32 : i32, i32, i32
  }
}

</mosaic_0001>

<llo_original>
// kernel: tpu_custom_call.1
$region0: #{tpu_custom_call.1}
  #allocation0 [shape = 'u32[]', space=smem, size = 0x4, offset = 0x4, fixed_abs, tag = 'smem constant byte address 0x4 - core index']
  #allocation1 [shape = 'u32[144,128]{1,0:T(1,128)}', space=vmem, size = 0x12000, scoped, tag = 'internal scratch']
  #allocation2 [shape = 'bf16[28,128]{1,0:T(8,128)(2,1)}', space=vmem, size = 0x2000, scoped, tag = 'scratch operand']
  #allocation3 [shape = 'bf16[28,128]{1,0:T(8,128)(2,1)}', space=vmem, size = 0x2000, scoped, tag = 'scratch operand']
  %s0 = inlined_call_operand.vmem [shape: bf16[2,1,28,128], index: 0, kind: input, shape index: {}]
  %s1 = inlined_call_operand.hbm [shape: bf16[5,640,128], index: 1, kind: input, shape index: {}]
  %s2 = inlined_call_operand.vmem [shape: f32[5,1,128], index: 2, kind: input, shape index: {}]
  %s3 = inlined_call_operand.hbm [shape: f32[2,8,128], index: 3, kind: output, shape index: {}]
  %s4 = sld [smem:[#allocation0]]
  $region49: #{tpu_custom_call.1} parent=0
    _
  %s6 = ssub.s32 1, %s4
  %s7 = scalar_select 0, %s6, %s4
  $region1: #{tpu_custom_call.1} parent=0
    #allocation4 [shape = 'u8[819200]{0}', space=vmem, size = 0xc8000, scoped, tag = 'input window, operand 1, single buffered']
    #allocation5 [shape = 's32[2]{0}', space=sflag, size = 0x8, scoped, tag = 'scoped memory for tpu_custom_call.1']
    #allocation6 [shape = 's32[2]{0}', space=sflag, size = 0x8, scoped, tag = 'scoped memory for tpu_custom_call.1']
    #allocation7 [shape = 'u8[8192]{0}', space=vmem, size = 0x2000, scoped, tag = 'output window, operand 0']
    %8 = vsyncpa [#allocation5], 0
    %9 = vsyncpa [#allocation6], 0
    %s10 = scalar_lea.sflag [#allocation6], 1
    %11 = vsyncpa %s10, 0
    loop: start=0, step=1, limit=4
    $region2: #{tpu_custom_call.1} parent=1 // loop_pre_header
      _
    $region3: #{tpu_custom_call.1} parent=1 // loop_header
      %s13 = sphi 0, %s17
      %p14 = scmp.ge.s32.totalorder %s13, 4
      %s20 = sphi 0, %s32
      %s21 = sphi 0, %s28
      %s22 = sphi 0, %s20
      %s23 = sphi 0, %s21
      %s24 = sphi 0, %s22
      %s25 = sphi 0, %s23
      %s37 = sphi 0, %s39
      %s40 = sphi 0, %s37
      %s41 = sphi 0, %s40
      %s57 = sphi 0, %s41
      %s61 = sphi 0, %s61
      %s63 = sphi 0, %s61
      %s64 = sphi 0, %s63
      %s78 = sphi 0, %s64
      %s82 = sphi 0, %s82
      %s84 = sphi 0, %s82
      %s85 = sphi 0, %s84
      %s99 = sphi 0, %s85
      %s107 = sphi 0, %s109
      %s110 = sphi 0, %s107
      %s111 = sphi 0, %s110
      %s127 = sphi 0, %s111
    $region4: #{tpu_custom_call.1} parent=1 // loop_header_branch
      %16 = sbr.rel (%p14) target = $region8
    $region5: #{tpu_custom_call.1} parent=1 // loop_body
      %s18 = ssub.s32 %s13, 1
      %s19 = ssub.s32 %s13, 2
      %s26 = sadd.s32 1, %s21
      %p27 = scmp.ge.s32.totalorder %s26, 1
      %s28 = scalar_select %p27, 0, %s26
      %s29 = sadd.s32 1, %s20
      %s30 = scalar_select %p27, %s29, %s20
      %p31 = scmp.ge.s32.totalorder %s30, 2
      %s32 = scalar_select %p31, 0, %s30
      %s33 = ssub.s32 %s20, %s32
      %s34 = ssub.s32 %s21, %s28
      %s35 = sor.u32 %s33, %s34
      %p36 = scmp.eq.s32.totalorder %s35, 0
      %s38 = sadd.s32 %s37, 1
      %s39 = scalar_select %p36, %s37, %s38
      %p42 = pneg %p36
      %p43 = scmp.eq.s32.totalorder %s13, 1
      %p44 = por %p42, %p43
      %p45 = scmp.ne.s32.totalorder %s37, %s40
      %p46 = scmp.eq.s32.totalorder %s13, 0
      %p47 = por %p45, %p46
      %p48 = scmp.ne.s32.totalorder %s37, %s40
      %p49 = scmp.eq.s32.totalorder %s18, 1
      %p50 = por %p48, %p49
      %p51 = scmp.ne.s32.totalorder %s40, %s41
      %p52 = scmp.eq.s32.totalorder %s18, 0
      %p53 = por %p51, %p52
      %p54 = scmp.ne.s32.totalorder %s40, %s41
      %p55 = scmp.eq.s32.totalorder %s19, 1
      %p56 = por %p54, %p55
      %p58 = scmp.ne.s32.totalorder %s41, %s57
      %p59 = scmp.eq.s32.totalorder %s19, 0
      %p60 = por %p58, %p59
      %s62 = sadd.s32 %s61, 1
      %p65 = scmp.eq.s32.totalorder %s13, 1
      %p66 = scmp.ne.s32.totalorder %s61, %s63
      %p67 = scmp.eq.s32.totalorder %s13, 0
      %p68 = por %p66, %p67
      %p69 = scmp.ne.s32.totalorder %s61, %s63
      %p70 = scmp.eq.s32.totalorder %s18, 1
      %p71 = por %p69, %p70
      %p72 = scmp.ne.s32.totalorder %s63, %s64
      %p73 = scmp.eq.s32.totalorder %s18, 0
      %p74 = por %p72, %p73
      %p75 = scmp.ne.s32.totalorder %s63, %s64
      %p76 = scmp.eq.s32.totalorder %s19, 1
      %p77 = por %p75, %p76
      %p79 = scmp.ne.s32.totalorder %s64, %s78
      %p80 = scmp.eq.s32.totalorder %s19, 0
      %p81 = por %p79, %p80
      %s83 = sadd.s32 %s82, 1
      %p86 = scmp.eq.s32.totalorder %s13, 1
      %p87 = scmp.ne.s32.totalorder %s82, %s84
      %p88 = scmp.eq.s32.totalorder %s13, 0
      %p89 = por %p87, %p88
      %p90 = scmp.ne.s32.totalorder %s82, %s84
      %p91 = scmp.eq.s32.totalorder %s18, 1
      %p92 = por %p90, %p91
      %p93 = scmp.ne.s32.totalorder %s84, %s85
      %p94 = scmp.eq.s32.totalorder %s18, 0
      %p95 = por %p93, %p94
      %p96 = scmp.ne.s32.totalorder %s84, %s85
      %p97 = scmp.eq.s32.totalorder %s19, 1
      %p98 = por %p96, %p97
      %p100 = scmp.ne.s32.totalorder %s85, %s99
      %p101 = scmp.eq.s32.totalorder %s19, 0
      %p102 = por %p100, %p101
      %s103 = ssub.s32 %s20, %s32
      %s104 = ssub.s32 %s21, %s28
      %s105 = sor.u32 %s103, %s104
      %p106 = scmp.eq.s32.totalorder %s105, 0
      %s108 = sadd.s32 %s107, 1
      %s109 = scalar_select %p106, %s107, %s108
      %p112 = pneg %p106
      %p113 = scmp.eq.s32.totalorder %s13, 1
      %p114 = por %p112, %p113
      %p115 = scmp.ne.s32.totalorder %s107, %s110
      %p116 = scmp.eq.s32.totalorder %s13, 0
      %p117 = por %p115, %p116
      %p118 = scmp.ne.s32.totalorder %s107, %s110
      %p119 = scmp.eq.s32.totalorder %s18, 1
      %p120 = por %p118, %p119
      %p121 = scmp.ne.s32.totalorder %s110, %s111
      %p122 = scmp.eq.s32.totalorder %s18, 0
      %p123 = por %p121, %p122
      %p124 = scmp.ne.s32.totalorder %s110, %s111
      %p125 = scmp.eq.s32.totalorder %s19, 1
      %p126 = por %p124, %p125
      %p128 = scmp.ne.s32.totalorder %s111, %s127
      %p129 = scmp.eq.s32.totalorder %s19, 0
      %p130 = por %p128, %p129
      %p131 = scmp.le.s32.totalorder 1, %s13
      %p132 = scmp.lt.s32.totalorder %s13, 3
      %p133 = pnand %p131, %p132
      %p134 = pneg %p133
      // Predicated region
      $region9: #{tpu_custom_call.1} parent=5 // pred_check
        _
      $region10: #{tpu_custom_call.1} parent=5 // pred_check_branch
        %136 = sbr.rel (%p133) target = $region12
      $region11: #{tpu_custom_call.1} parent=5 // pred_region
        %s137 = ssub.s32 %s13, 1
        // Predicated region
        $region13: #{tpu_custom_call.1} parent=11 // pred_check
          %p138 = pneg %p74
        $region14: #{tpu_custom_call.1} parent=11 // pred_check_branch
          %140 = sbr.rel (%p138) target = $region16
        $region15: #{tpu_custom_call.1} parent=11 // pred_region
          %s142 = ssub.s32 25600, 25600
          %143 = vsyncadd [#allocation5], %s142
          %s144 = sshll.u32 [#allocation4], 4
          %s145 = int_to_ptr.vmem [resolvable:$true] %s144
          %150 = dma.hbm_to_vmem [thread:$0]  %s1, 25600, %s145, [#allocation5], 64, 64, 4
        $region16: #{tpu_custom_call.1} parent=11 // pred_fallthru
          _
        // Predicated region
        $region17: #{tpu_custom_call.1} parent=11 // pred_check
          %p151 = pneg %p95
        $region18: #{tpu_custom_call.1} parent=11 // pred_check_branch
          %153 = sbr.rel (%p151) target = $region20
        $region19: #{tpu_custom_call.1} parent=11 // pred_region
          _
        $region20: #{tpu_custom_call.1} parent=11 // pred_fallthru
          _
      $region12: #{tpu_custom_call.1} parent=5 // pred_fallthru
        _
      %p154 = scmp.lt.s32.totalorder %s13, 2
      // Predicated region
      $region21: #{tpu_custom_call.1} parent=5 // pred_check
        %p155 = pneg %p154
      $region22: #{tpu_custom_call.1} parent=5 // pred_check_branch
        %157 = sbr.rel (%p155) target = $region24
      $region23: #{tpu_custom_call.1} parent=5 // pred_region
        // Predicated region
        $region25: #{tpu_custom_call.1} parent=23 // pred_check
          %p158 = pneg %p47
        $region26: #{tpu_custom_call.1} parent=23 // pred_check_branch
          %160 = sbr.rel (%p158) target = $region28
        $region27: #{tpu_custom_call.1} parent=23 // pred_region
          %p161 = scmp.lt.s32.totalorder %s20, 1
          %s162 = scalar_select %p161, %s20, 1
          %p163 = scmp.lt.s32.totalorder %s21, 0
          %s164 = scalar_select %p163, %s21, 0
          %s165 = smul.addr %s164, 4
          %s166 = smul.addr %s162, 4
          %s167 = sadd.s32 %s165, %s166
          %s168 = smul.addr %s167, 4
          %s169 = scalar_lea.vmem %s0, %s168
        $region28: #{tpu_custom_call.1} parent=23 // pred_fallthru
          _
      $region24: #{tpu_custom_call.1} parent=5 // pred_fallthru
        _
      %p170 = scmp.le.s32.totalorder 1, %s13
      %p171 = scmp.lt.s32.totalorder %s13, 3
      %p172 = pnand %p170, %p171
      %p173 = pneg %p172
      // Predicated region
      $region29: #{tpu_custom_call.1} parent=5 // pred_check
        _
      $region30: #{tpu_custom_call.1} parent=5 // pred_check_branch
        %175 = sbr.rel (%p172) target = $region32
      $region31: #{tpu_custom_call.1} parent=5 // pred_region
        %s176 = ssub.s32 %s13, 1
        // Predicated region
        $region33: #{tpu_custom_call.1} parent=31 // pred_check
          %p177 = pneg %p74
        $region34: #{tpu_custom_call.1} parent=31 // pred_check_branch
          %179 = sbr.rel (%p177) target = $region36
        $region35: #{tpu_custom_call.1} parent=31 // pred_region
          %180 = dma.done [#allocation5], 25600
        $region36: #{tpu_custom_call.1} parent=31 // pred_fallthru
          _
        %p181 = scmp.lt.s32.totalorder %s22, 1
        %s182 = scalar_select %p181, %s22, 1
        %p183 = scmp.lt.s32.totalorder %s23, 0
        %s184 = scalar_select %p183, %s23, 0
        %s185 = smul.addr %s184, 4
        %s186 = smul.addr %s182, 4
        %s187 = sadd.s32 %s185, %s186
        %s188 = smul.addr %s187, 4
        %s189 = scalar_lea.vmem %s0, %s188
        %p190 = pneg %p53
        %p191 = pneg %p50
        %p192 = pneg %p74
        %p193 = pneg %p71
        %p194 = pneg %p95
        %p195 = pneg %p92
        %p196 = pneg %p123
        %p197 = pneg %p120
        %s198 = sand.u32 %s110, 1
        %s199 = scalar_lea.sflag [#allocation6], %s198
        %s200 = sand.u32 %s110, 1
        %s201 = smul.addr %s200, 8
        %s202 = scalar_lea.vmem [#allocation7], %s201
        %p203 = scmp.lt.s32.totalorder %s22, 1
        %s204 = scalar_select %p203, %s22, 1
        %p205 = scmp.lt.s32.totalorder %s23, 0
        %s206 = scalar_select %p205, %s23, 0
        %s207 = smul.addr %s206, 4
        %s208 = smul.addr %s204, 4
        %s209 = sadd.s32 %s207, %s208
        %s210 = smul.addr %s209, 4
        %s211 = scalar_lea.vmem %s0, %s210
        %s213 = smul.u32 %s23, 8
        %v214 = vld [vmem:[%s211] sm:$0xf]
        %v215 = vld [vmem:[%s211 + $0x4] sm:$0xf]
        %v216 = vld [vmem:[%s211 + $0x8] sm:$0xf]
        %v217 = vld [vmem:[%s211 + $0xc] sm:$0x1]
        %v218 = vld [vmem:[%s211] sm:$0xe]
        %v219 = vld [vmem:[%s211 + $0xc] sm:$0x3]
        %v220 = vld [vmem:[%s211] sm:$0xc]
        %v224 = vunpack.c.l.b16 %v214
        %v225 = vunpack.c.l.b16 %v215
        %v226 = vunpack.c.l.b16 %v216
        %v227 = vpack.c.b16 %v225, %v224
        %v228 = vpack.c.b16 %v226, %v226
        %v232 = vunpack.c.l.b16 %v217
        %v233 = vpack.c.b16 %v232, %v226
        %vm234 = vsmask.f32 7424
        %v236 = vshrl.u32 %v227, 16
        %v238 = vshll.u32 %v227, 16
        %v240 = vrot.slane %v238, 1
        %v241 = vor.u32 %v236, %v240
        %v243 = vshll.u32 %v233, 16
        %v245 = vrot.slane %v243, 1
        %v246 = vsel %vm234, %v241, %v245
        %v247 = vshrl.u32 %v233, 16
        %v249 = vor.u32 %v247, %v245
        %v253 = vunpack.c.l.b16 %v218
        %v254 = vpack.c.b16 %v225, %v253
        %vm255 = vcmask 1046528
        %v256 = vrot.slane %v254, 1
        %v257 = vrot.slane %v233, 1
        %v258 = vsel %vm255, %v256, %v257
        %v262 = vunpack.c.l.b16 %v219
        %v263 = vpack.c.b16 %v262, %v226
        %vm264 = vsmask.f32 6400
        %v266 = vshrl.u32 %v254, 16
        %v268 = vrot.slane %v266, 1
        %v269 = vshll.u32 %v254, 16
        %v271 = vrot.slane %v269, 2
        %v272 = vor.u32 %v268, %v271
        %v274 = vshrl.u32 %v263, 16
        %v276 = vrot.slane %v274, 1
        %v277 = vshll.u32 %v263, 16
        %v279 = vrot.slane %v277, 2
        %v280 = vor.u32 %v276, %v279
        %v281 = vsel %vm264, %v272, %v280
        %v285 = vunpack.c.l.b16 %v220
        %v286 = vpack.c.b16 %v225, %v285
        %vm287 = vcmask 1045504
        %v288 = vrot.slane %v286, 2
        %v289 = vrot.slane %v263, 2
        %v290 = vsel %vm287, %v288, %v289
        %v293 = vld [vmem:[#allocation4] sm:$0xf]
        %v294 = vld [vmem:[#allocation4 + $0x4] sm:$0xf]
        %v295 = vld [vmem:[#allocation4 + $0x8] sm:$0xf]
        %v296 = vld [vmem:[#allocation4 + $0xc] sm:$0xf]
        %v297 = vld [vmem:[#allocation4 + $0x10] sm:$0xf]
        %v298 = vld [vmem:[#allocation4 + $0x14] sm:$0xf]
        %v299 = vld [vmem:[#allocation4 + $0x18] sm:$0xf]
        %v300 = vld [vmem:[#allocation4 + $0x1c] sm:$0xf]
        %v301 = vld [vmem:[#allocation4 + $0x20] sm:$0xf]
        %v302 = vld [vmem:[#allocation4 + $0x24] sm:$0xf]
        %v303 = vld [vmem:[#allocation4 + $0x28] sm:$0xf]
        %v304 = vld [vmem:[#allocation4 + $0x2c] sm:$0xf]
        %v305 = vld [vmem:[#allocation4 + $0x30] sm:$0xf]
        %v306 = vld [vmem:[#allocation4 + $0x34] sm:$0xf]
        %v307 = vld [vmem:[#allocation4 + $0x38] sm:$0xf]
        %v308 = vld [vmem:[#allocation4 + $0x3c] sm:$0xf]
        %v309 = vld [vmem:[#allocation4 + $0x40] sm:$0xf]
        %v310 = vld [vmem:[#allocation4 + $0x44] sm:$0xf]
        %v311 = vld [vmem:[#allocation4 + $0x48] sm:$0xf]
        %v312 = vld [vmem:[#allocation4 + $0x4c] sm:$0xf]
        %v313 = vld [vmem:[#allocation4 + $0x50] sm:$0xf]
        %v314 = vld [vmem:[#allocation4 + $0x54] sm:$0xf]
        %v315 = vld [vmem:[#allocation4 + $0x58] sm:$0xf]
        %v316 = vld [vmem:[#allocation4 + $0x5c] sm:$0xf]
        %v317 = vld [vmem:[#allocation4 + $0x60] sm:$0xf]
        %v318 = vld [vmem:[#allocation4 + $0x64] sm:$0xf]
        %v319 = vld [vmem:[#allocation4 + $0x68] sm:$0xf]
        %v320 = vld [vmem:[#allocation4 + $0x6c] sm:$0xf]
        %v321 = vld [vmem:[#allocation4 + $0x70] sm:$0xf]
        %v322 = vld [vmem:[#allocation4 + $0x74] sm:$0xf]
        %v323 = vld [vmem:[#allocation4 + $0x78] sm:$0xf]
        %v324 = vld [vmem:[#allocation4 + $0x7c] sm:$0xf]
        %v325 = vld [vmem:[#allocation4 + $0x80] sm:$0xf]
        %v326 = vld [vmem:[#allocation4 + $0x84] sm:$0xf]
        %v327 = vld [vmem:[#allocation4 + $0x88] sm:$0xf]
        %v328 = vld [vmem:[#allocation4 + $0x8c] sm:$0xf]
        %v329 = vld [vmem:[#allocation4 + $0x90] sm:$0xf]
        %v330 = vld [vmem:[#allocation4 + $0x94] sm:$0xf]
        %v331 = vld [vmem:[#allocation4 + $0x98] sm:$0xf]
        %v332 = vld [vmem:[#allocation4 + $0x9c] sm:$0xf]
        %v333 = vld [vmem:[#allocation4 + $0xa0] sm:$0xf]
        %v334 = vld [vmem:[#allocation4 + $0xa4] sm:$0xf]
        %v335 = vld [vmem:[#allocation4 + $0xa8] sm:$0xf]
        %v336 = vld [vmem:[#allocation4 + $0xac] sm:$0xf]
        %v337 = vld [vmem:[#allocation4 + $0xb0] sm:$0xf]
        %v338 = vld [vmem:[#allocation4 + $0xb4] sm:$0xf]
        %v339 = vld [vmem:[#allocation4 + $0xb8] sm:$0xf]
        %v340 = vld [vmem:[#allocation4 + $0xbc] sm:$0xf]
        %v341 = vld [vmem:[#allocation4 + $0xc0] sm:$0xf]
        %v342 = vld [vmem:[#allocation4 + $0xc4] sm:$0xf]
        %v343 = vld [vmem:[#allocation4 + $0xc8] sm:$0xf]
        %v344 = vld [vmem:[#allocation4 + $0xcc] sm:$0xf]
        %v345 = vld [vmem:[#allocation4 + $0xd0] sm:$0xf]
        %v346 = vld [vmem:[#allocation4 + $0xd4] sm:$0xf]
        %v347 = vld [vmem:[#allocation4 + $0xd8] sm:$0xf]
        %v348 = vld [vmem:[#allocation4 + $0xdc] sm:$0xf]
        %v349 = vld [vmem:[#allocation4 + $0xe0] sm:$0xf]
        %v350 = vld [vmem:[#allocation4 + $0xe4] sm:$0xf]
        %v351 = vld [vmem:[#allocation4 + $0xe8] sm:$0xf]
        %v352 = vld [vmem:[#allocation4 + $0xec] sm:$0xf]
        %v353 = vld [vmem:[#allocation4 + $0xf0] sm:$0xf]
        %v354 = vld [vmem:[#allocation4 + $0xf4] sm:$0xf]
        %v355 = vld [vmem:[#allocation4 + $0xf8] sm:$0xf]
        %v356 = vld [vmem:[#allocation4 + $0xfc] sm:$0xf]
        %v357 = vld [vmem:[#allocation4 + $0x100] sm:$0xf]
        %v358 = vld [vmem:[#allocation4 + $0x104] sm:$0xf]
        %v359 = vld [vmem:[#allocation4 + $0x108] sm:$0xf]
        %v360 = vld [vmem:[#allocation4 + $0x10c] sm:$0xf]
        %v361 = vld [vmem:[#allocation4 + $0x110] sm:$0xf]
        %v362 = vld [vmem:[#allocation4 + $0x114] sm:$0xf]
        %v363 = vld [vmem:[#allocation4 + $0x118] sm:$0xf]
        %v364 = vld [vmem:[#allocation4 + $0x11c] sm:$0xf]
        %v365 = vld [vmem:[#allocation4 + $0x120] sm:$0xf]
        %v366 = vld [vmem:[#allocation4 + $0x124] sm:$0xf]
        %v367 = vld [vmem:[#allocation4 + $0x128] sm:$0xf]
        %v368 = vld [vmem:[#allocation4 + $0x12c] sm:$0xf]
        %v369 = vld [vmem:[#allocation4 + $0x130] sm:$0xf]
        %v370 = vld [vmem:[#allocation4 + $0x134] sm:$0xf]
        %v371 = vld [vmem:[#allocation4 + $0x138] sm:$0xf]
        %v372 = vld [vmem:[#allocation4 + $0x13c] sm:$0xf]
        %v373 = vld [vmem:[%s2] sm:$0x1]
        %v375 = vlaneseq
        %v376 = vshrl.u32 %v375, 7
        %v377 = vsub.s32 0, %v376
        %v378 = vrot.slane %v373, %v377
        %v460 = vunpack.c.l.b16 %v293
        %v461 = vunpack.c.l.b16 %v294
        %v462 = vunpack.c.l.b16 %v295
        %v463 = vunpack.c.l.b16 %v296
        %v464 = vunpack.c.l.b16 %v297
        %v465 = vunpack.c.l.b16 %v298
        %v466 = vunpack.c.l.b16 %v299
        %v467 = vunpack.c.l.b16 %v300
        %v468 = vunpack.c.l.b16 %v301
        %v469 = vunpack.c.l.b16 %v302
        %v470 = vunpack.c.l.b16 %v303
        %v471 = vunpack.c.l.b16 %v304
        %v472 = vunpack.c.l.b16 %v305
        %v473 = vunpack.c.l.b16 %v306
        %v474 = vunpack.c.l.b16 %v307
        %v475 = vunpack.c.l.b16 %v308
        %v476 = vunpack.c.l.b16 %v309
        %v477 = vunpack.c.l.b16 %v310
        %v478 = vunpack.c.l.b16 %v311
        %v479 = vunpack.c.l.b16 %v312
        %v480 = vunpack.c.l.b16 %v313
        %v481 = vunpack.c.l.b16 %v314
        %v482 = vunpack.c.l.b16 %v315
        %v483 = vunpack.c.l.b16 %v316
        %v484 = vunpack.c.l.b16 %v317
        %v485 = vunpack.c.l.b16 %v318
        %v486 = vunpack.c.l.b16 %v319
        %v487 = vunpack.c.l.b16 %v320
        %v488 = vunpack.c.l.b16 %v321
        %v489 = vunpack.c.l.b16 %v322
        %v490 = vunpack.c.l.b16 %v323
        %v491 = vunpack.c.l.b16 %v324
        %v492 = vunpack.c.l.b16 %v325
        %v493 = vunpack.c.l.b16 %v326
        %v494 = vunpack.c.l.b16 %v327
        %v495 = vunpack.c.l.b16 %v328
        %v496 = vunpack.c.l.b16 %v329
        %v497 = vunpack.c.l.b16 %v330
        %v498 = vunpack.c.l.b16 %v331
        %v499 = vunpack.c.l.b16 %v332
        %v500 = vunpack.c.l.b16 %v333
        %v501 = vunpack.c.l.b16 %v334
        %v502 = vunpack.c.l.b16 %v335
        %v503 = vunpack.c.l.b16 %v336
        %v504 = vunpack.c.l.b16 %v337
        %v505 = vunpack.c.l.b16 %v338
        %v506 = vunpack.c.l.b16 %v339
        %v507 = vunpack.c.l.b16 %v340
        %v508 = vunpack.c.l.b16 %v341
        %v509 = vunpack.c.l.b16 %v342
        %v510 = vunpack.c.l.b16 %v343
        %v511 = vunpack.c.l.b16 %v344
        %v512 = vunpack.c.l.b16 %v345
        %v513 = vunpack.c.l.b16 %v346
        %v514 = vunpack.c.l.b16 %v347
        %v515 = vunpack.c.l.b16 %v348
        %v516 = vunpack.c.l.b16 %v349
        %v517 = vunpack.c.l.b16 %v350
        %v518 = vunpack.c.l.b16 %v351
        %v519 = vunpack.c.l.b16 %v352
        %v520 = vunpack.c.l.b16 %v353
        %v521 = vunpack.c.l.b16 %v354
        %v522 = vunpack.c.l.b16 %v355
        %v523 = vunpack.c.l.b16 %v356
        %v524 = vunpack.c.l.b16 %v357
        %v525 = vunpack.c.l.b16 %v358
        %v526 = vunpack.c.l.b16 %v359
        %v527 = vunpack.c.l.b16 %v360
        %v528 = vunpack.c.l.b16 %v361
        %v529 = vunpack.c.l.b16 %v362
        %v530 = vunpack.c.l.b16 %v363
        %v531 = vunpack.c.l.b16 %v364
        %v532 = vunpack.c.l.b16 %v365
        %v533 = vunpack.c.l.b16 %v366
        %v534 = vunpack.c.l.b16 %v367
        %v535 = vunpack.c.l.b16 %v368
        %v536 = vunpack.c.l.b16 %v369
        %v537 = vunpack.c.l.b16 %v370
        %v538 = vunpack.c.l.b16 %v371
        %v539 = vunpack.c.l.b16 %v372
        %v540 = vpack.c.b16 %v461, %v460
        %v541 = vpack.c.b16 %v463, %v462
        %v542 = vpack.c.b16 %v465, %v464
        %v543 = vpack.c.b16 %v467, %v466
        %v544 = vpack.c.b16 %v469, %v468
        %v545 = vpack.c.b16 %v471, %v470
        %v546 = vpack.c.b16 %v473, %v472
        %v547 = vpack.c.b16 %v475, %v474
        %v548 = vpack.c.b16 %v477, %v476
        %v549 = vpack.c.b16 %v479, %v478
        %v550 = vpack.c.b16 %v481, %v480
        %v551 = vpack.c.b16 %v483, %v482
        %v552 = vpack.c.b16 %v485, %v484
        %v553 = vpack.c.b16 %v487, %v486
        %v554 = vpack.c.b16 %v489, %v488
        %v555 = vpack.c.b16 %v491, %v490
        %v556 = vpack.c.b16 %v493, %v492
        %v557 = vpack.c.b16 %v495, %v494
        %v558 = vpack.c.b16 %v497, %v496
        %v559 = vpack.c.b16 %v499, %v498
        %v560 = vpack.c.b16 %v501, %v500
        %v561 = vpack.c.b16 %v503, %v502
        %v562 = vpack.c.b16 %v505, %v504
        %v563 = vpack.c.b16 %v507, %v506
        %v564 = vpack.c.b16 %v509, %v508
        %v565 = vpack.c.b16 %v511, %v510
        %v566 = vpack.c.b16 %v513, %v512
        %v567 = vpack.c.b16 %v515, %v514
        %v568 = vpack.c.b16 %v517, %v516
        %v569 = vpack.c.b16 %v519, %v518
        %v570 = vpack.c.b16 %v521, %v520
        %v571 = vpack.c.b16 %v523, %v522
        %v572 = vpack.c.b16 %v525, %v524
        %v573 = vpack.c.b16 %v527, %v526
        %v574 = vpack.c.b16 %v529, %v528
        %v575 = vpack.c.b16 %v531, %v530
        %v576 = vpack.c.b16 %v533, %v532
        %v577 = vpack.c.b16 %v535, %v534
        %v578 = vpack.c.b16 %v537, %v536
        %v579 = vpack.c.b16 %v539, %v538
        %620 = vmatprep.subr.bf16.mxu0 0
        %621 = vmatpush1.bf16.msra.mxu0 %v547
        %622 = vmatprep.subr.bf16.mxu0 0
        %623 = vmatpush1.bf16.msra.mxu0 %v546
        %624 = vmatprep.subr.bf16.mxu0 0
        %625 = vmatpush1.bf16.msra.mxu0 %v545
        %626 = vmatprep.subr.bf16.mxu0 0
        %627 = vmatpush1.bf16.msra.mxu0 %v544
        %628 = vmatprep.subr.bf16.mxu0 0
        %629 = vmatpush1.bf16.msra.mxu0 %v543
        %630 = vmatprep.subr.bf16.mxu0 0
        %631 = vmatpush1.bf16.msra.mxu0 %v542
        %632 = vmatprep.subr.bf16.mxu0 0
        %633 = vmatpush1.bf16.msra.mxu0 %v541
        %634 = vmatprep.subr.bf16.mxu0 0
        %635 = vmatpush1.bf16.msra.mxu0 %v540
        %636 = vmatprep.subr.bf16.mxu0 0
        %637 = vmatpush2.bf16.msra.mxu0 %v555
        %638 = vmatprep.subr.bf16.mxu0 0
        %639 = vmatpush2.bf16.msra.mxu0 %v554
        %640 = vmatprep.subr.bf16.mxu0 0
        %641 = vmatpush2.bf16.msra.mxu0 %v553
        %642 = vmatprep.subr.bf16.mxu0 0
        %643 = vmatpush2.bf16.msra.mxu0 %v552
        %644 = vmatprep.subr.bf16.mxu0 0
        %645 = vmatpush2.bf16.msra.mxu0 %v551
        %646 = vmatprep.subr.bf16.mxu0 0
        %647 = vmatpush2.bf16.msra.mxu0 %v550
        %648 = vmatprep.subr.bf16.mxu0 0
        %649 = vmatpush2.bf16.msra.mxu0 %v549
        %650 = vmatprep.subr.bf16.mxu0 0
        %651 = vmatpush2.bf16.msra.mxu0 %v548
        %652 = vmatprep.mubr.bf16.mxu0 %v246
        %653 = vmatmul.mubr.bf16.gmra.mxu0 %v227
        %v654 = vpop.f32.mrf.mxu0
        %v655 = vadd.f32 %v378, %v654
        %v656 = vpop.f32.mrf.mxu0
        %v657 = vpop.f32.mrf.mxu0
        %v658 = vadd.f32 %v378, %v657
        %v659 = vpop.f32.mrf.mxu0
        %660 = vmatprep.mubr.bf16.mxu0 %v249
        %661 = vmatmul.mubr.bf16.gmra.mxu0 %v228
        %v662 = vpop.f32.mrf.mxu0
        %v663 = vadd.f32 %v378, %v662
        %v664 = vpop.f32.mrf.mxu0
        %v665 = vpop.f32.mrf.mxu0
        %v666 = vpop.f32.mrf.mxu0
        %667 = vdwg.mxu0
        %668 = vmatprep.subr.bf16.mxu0 0
        %669 = vmatpush1.bf16.msra.mxu0 %v563
        %670 = vmatprep.subr.bf16.mxu0 0
        %671 = vmatpush1.bf16.msra.mxu0 %v562
        %672 = vmatprep.subr.bf16.mxu0 0
        %673 = vmatpush1.bf16.msra.mxu0 %v561
        %674 = vmatprep.subr.bf16.mxu0 0
        %675 = vmatpush1.bf16.msra.mxu0 %v560
        %676 = vmatprep.subr.bf16.mxu0 0
        %677 = vmatpush1.bf16.msra.mxu0 %v559
        %678 = vmatprep.subr.bf16.mxu0 0
        %679 = vmatpush1.bf16.msra.mxu0 %v558
        %680 = vmatprep.subr.bf16.mxu0 0
        %681 = vmatpush1.bf16.msra.mxu0 %v557
        %682 = vmatprep.subr.bf16.mxu0 0
        %683 = vmatpush1.bf16.msra.mxu0 %v556
        %684 = vmatprep.subr.bf16.mxu0 0
        %685 = vmatpush2.bf16.msra.mxu0 %v571
        %686 = vmatprep.subr.bf16.mxu0 0
        %687 = vmatpush2.bf16.msra.mxu0 %v570
        %688 = vmatprep.subr.bf16.mxu0 0
        %689 = vmatpush2.bf16.msra.mxu0 %v569
        %690 = vmatprep.subr.bf16.mxu0 0
        %691 = vmatpush2.bf16.msra.mxu0 %v568
        %692 = vmatprep.subr.bf16.mxu0 0
        %693 = vmatpush2.bf16.msra.mxu0 %v567
        %694 = vmatprep.subr.bf16.mxu0 0
        %695 = vmatpush2.bf16.msra.mxu0 %v566
        %696 = vmatprep.subr.bf16.mxu0 0
        %697 = vmatpush2.bf16.msra.mxu0 %v565
        %698 = vmatprep.subr.bf16.mxu0 0
        %699 = vmatpush2.bf16.msra.mxu0 %v564
        %700 = vmatprep.mubr.bf16.mxu0 %v281
        %701 = vmatmul.mubr.bf16.gmra.mxu0 %v258
        %v702 = vpop.f32.mrf.mxu0
        %v703 = vadd.f32 %v655, %v702
        %v704 = vpop.f32.mrf.mxu0
        %v705 = vpop.f32.mrf.mxu0
        %v706 = vadd.f32 %v658, %v705
        %v707 = vpop.f32.mrf.mxu0
        %708 = vmatprep.mubr.bf16.mxu0 %v280
        %709 = vmatmul.mubr.bf16.gmra.mxu0 %v257
        %v710 = vpop.f32.mrf.mxu0
        %v711 = vadd.f32 %v663, %v710
        %v712 = vpop.f32.mrf.mxu0
        %v713 = vpop.f32.mrf.mxu0
        %v714 = vpop.f32.mrf.mxu0
        %715 = vdwg.mxu0
        %716 = vmatprep.subr.bf16.mxu0 0
        %717 = vmatpush1.bf16.msra.mxu0 %v579
        %718 = vmatprep.subr.bf16.mxu0 0
        %719 = vmatpush1.bf16.msra.mxu0 %v578
        %720 = vmatprep.subr.bf16.mxu0 0
        %721 = vmatpush1.bf16.msra.mxu0 %v577
        %722 = vmatprep.subr.bf16.mxu0 0
        %723 = vmatpush1.bf16.msra.mxu0 %v576
        %724 = vmatprep.subr.bf16.mxu0 0
        %725 = vmatpush1.bf16.msra.mxu0 %v575
        %726 = vmatprep.subr.bf16.mxu0 0
        %727 = vmatpush1.bf16.msra.mxu0 %v574
        %728 = vmatprep.subr.bf16.mxu0 0
        %729 = vmatpush1.bf16.msra.mxu0 %v573
        %730 = vmatprep.subr.bf16.mxu0 0
        %731 = vmatpush1.bf16.msra.mxu0 %v572
        %732 = vmatprep.subr.bf16.mxu0 0
        %733 = vmatpush2.bf16.msra.mxu0 0
        %734 = vmatprep.subr.bf16.mxu0 0
        %735 = vmatpush2.bf16.msra.mxu0 0
        %736 = vmatprep.subr.bf16.mxu0 0
        %737 = vmatpush2.bf16.msra.mxu0 0
        %738 = vmatprep.subr.bf16.mxu0 0
        %739 = vmatpush2.bf16.msra.mxu0 0
        %740 = vmatprep.subr.bf16.mxu0 0
        %741 = vmatpush2.bf16.msra.mxu0 0
        %742 = vmatprep.subr.bf16.mxu0 0
        %743 = vmatpush2.bf16.msra.mxu0 0
        %744 = vmatprep.subr.bf16.mxu0 0
        %745 = vmatpush2.bf16.msra.mxu0 0
        %746 = vmatprep.subr.bf16.mxu0 0
        %747 = vmatpush2.bf16.msra.mxu0 0
        %748 = vmatprep.mubr.bf16.mxu0 0
        %749 = vmatmul.mubr.bf16.gmra.mxu0 %v290
        %v750 = vpop.f32.mrf.mxu0
        %v751 = vadd.f32 %v703, %v750
        %v752 = vpop.f32.mrf.mxu0
        %v753 = vpop.f32.mrf.mxu0
        %v754 = vadd.f32 %v706, %v753
        %v755 = vpop.f32.mrf.mxu0
        %756 = vmatprep.mubr.bf16.mxu0 0
        %757 = vmatmul.mubr.bf16.gmra.mxu0 %v289
        %v758 = vpop.f32.mrf.mxu0
        %v759 = vadd.f32 %v711, %v758
        %v760 = vpop.f32.mrf.mxu0
        %v761 = vpop.f32.mrf.mxu0
        %v762 = vpop.f32.mrf.mxu0
        %763 = vdwg.mxu0
        %v764 = vtanh.pop %v751
        %v765 = vtanh.pop %v754
        %v766 = vtanh.pop %v759
        %s767 = sadd.s32 %s213, 4294967288
        %v768 = vlaneseq
        %v769 = vshrl.u32 %v768, 7
        %v770 = vadd.s32 %v769, 8
        %v771 = vadd.s32 %v769, 16
        %v772 = vstv %s767
        %v773 = vadd.s32 %v772, %v769
        %v774 = vadd.s32 %v772, %v770
        %v775 = vadd.s32 %v772, %v771
        %vm776 = vcmp.ge.s32.totalorder %v773, 0
        %vm777 = vcmp.ge.s32.totalorder %v774, 0
        %vm778 = vcmp.ge.s32.totalorder %v775, 0
        %vm779 = vcmp.lt.s32.totalorder %v773, 8
        %vm780 = vcmp.lt.s32.totalorder %v774, 8
        %vm781 = vcmp.lt.s32.totalorder %v775, 8
        %vm782 = vmand %vm776, %vm779
        %vm783 = vmand %vm777, %vm780
        %vm784 = vmand %vm778, %vm781
        %v785 = vsel %vm782, 1, 0
        %v786 = vsel %vm783, 1, 0
        %v787 = vsel %vm784, 1, 0
        %v788 = vcvt.s32.f32 %v785
        %v789 = vcvt.s32.f32 %v786
        %v790 = vcvt.s32.f32 %v787
        %v791 = vmul.f32 %v764, %v788
        %v792 = vmul.f32 %v765, %v789
        %v793 = vmul.f32 %v766, %v790
        %v794 = vpack.c.bf16 %v792, %v791
        %v795 = vpack.c.bf16 %v793, %v793
        %v798 = vunpack.c.l.b16 %v794
        %v799 = vunpack.c.h.b16 %v794
        %v800 = vunpack.c.l.b16 %v795
        %v801 = vpack.c.b16 %v798, %v798
        %v802 = vpack.c.b16 %v799, %v799
        %v803 = vpack.c.b16 %v800, %v800
        %vm804 = vcmask 1040384
        %vm805 = vcmask 1044484
        %vm806 = vmor %vm804, %vm805
        %v807 = vrot.slane %v801, 7
        %v808 = vrot.slane %v807, 4
        %v809 = vrot.slane %v802, 7
        %v810 = vsel %vm806, %v808, %v809
        %v811 = vrot.slane %v809, 4
        %v812 = vrot.slane %v803, 7
        %v813 = vsel %vm806, %v811, %v812
        %v814 = vrot.slane %v812, 4
        %819 = vst [vmem:[#allocation2] sm:$0xe] %v807
        %820 = vst [vmem:[#allocation2 + $0x4] sm:$0xf] %v810
        %821 = vst [vmem:[#allocation2 + $0x8] sm:$0xf] %v813
        %822 = vst [vmem:[#allocation2 + $0xc] sm:$0x1] %v814
        %v823 = vld [vmem:[#allocation2] sm:$0xe]
        %v824 = vld [vmem:[#allocation2 + $0x4] sm:$0xf]
        %v825 = vld [vmem:[#allocation2 + $0x8] sm:$0x7]
        %v826 = vld [vmem:[#allocation2 + $0x8] sm:$0xf]
        %v827 = vld [vmem:[#allocation2] sm:$0xc]
        %v828 = vld [vmem:[#allocation2 + $0xc] sm:$0x1]
        %v829 = vld [vmem:[#allocation2] sm:$0x8]
        %v833 = vunpack.c.l.b16 %v823
        %v834 = vunpack.c.l.b16 %v824
        %v835 = vunpack.c.l.b16 %v825
        %v836 = vpack.c.b16 %v834, %v833
        %v837 = vpack.c.b16 %v835, %v835
        %v839 = vunpack.c.l.b16 %v826
        %v840 = vpack.c.b16 %v839, %v839
        %v842 = vshrl.u32 %v836, 16
        %v844 = vshll.u32 %v836, 16
        %v846 = vrot.slane %v844, 1
        %v847 = vor.u32 %v842, %v846
        %v849 = vshll.u32 %v840, 16
        %v851 = vrot.slane %v849, 1
        %v852 = vsel %vm234, %v847, %v851
        %v853 = vshrl.u32 %v840, 16
        %v855 = vor.u32 %v853, %v851
        %v857 = vunpack.c.l.b16 %v827
        %v858 = vpack.c.b16 %v834, %v857
        %v859 = vrot.slane %v858, 1
        %v860 = vrot.slane %v840, 1
        %v861 = vsel %vm255, %v859, %v860
        %v863 = vunpack.c.l.b16 %v828
        %v864 = vpack.c.b16 %v863, %v839
        %v866 = vshrl.u32 %v858, 16
        %v868 = vrot.slane %v866, 1
        %v869 = vshll.u32 %v858, 16
        %v871 = vrot.slane %v869, 2
        %v872 = vor.u32 %v868, %v871
        %v874 = vshrl.u32 %v864, 16
        %v876 = vrot.slane %v874, 1
        %v877 = vshll.u32 %v864, 16
        %v879 = vrot.slane %v877, 2
        %v880 = vor.u32 %v876, %v879
        %v881 = vsel %vm264, %v872, %v880
        %v883 = vunpack.c.l.b16 %v829
        %v884 = vpack.c.b16 %v834, %v883
        %v885 = vrot.slane %v884, 2
        %v886 = vrot.slane %v864, 2
        %v887 = vsel %vm287, %v885, %v886
        %s888 = scalar_lea.vmem [#allocation4], 320
        %v889 = vld [vmem:[%s888] sm:$0xf]
        %v890 = vld [vmem:[%s888 + $0x4] sm:$0xf]
        %v891 = vld [vmem:[%s888 + $0x8] sm:$0xf]
        %v892 = vld [vmem:[%s888 + $0xc] sm:$0xf]
        %v893 = vld [vmem:[%s888 + $0x10] sm:$0xf]
        %v894 = vld [vmem:[%s888 + $0x14] sm:$0xf]
        %v895 = vld [vmem:[%s888 + $0x18] sm:$0xf]
        %v896 = vld [vmem:[%s888 + $0x1c] sm:$0xf]
        %v897 = vld [vmem:[%s888 + $0x20] sm:$0xf]
        %v898 = vld [vmem:[%s888 + $0x24] sm:$0xf]
        %v899 = vld [vmem:[%s888 + $0x28] sm:$0xf]
        %v900 = vld [vmem:[%s888 + $0x2c] sm:$0xf]
        %v901 = vld [vmem:[%s888 + $0x30] sm:$0xf]
        %v902 = vld [vmem:[%s888 + $0x34] sm:$0xf]
        %v903 = vld [vmem:[%s888 + $0x38] sm:$0xf]
        %v904 = vld [vmem:[%s888 + $0x3c] sm:$0xf]
        %v905 = vld [vmem:[%s888 + $0x40] sm:$0xf]
        %v906 = vld [vmem:[%s888 + $0x44] sm:$0xf]
        %v907 = vld [vmem:[%s888 + $0x48] sm:$0xf]
        %v908 = vld [vmem:[%s888 + $0x4c] sm:$0xf]
        %v909 = vld [vmem:[%s888 + $0x50] sm:$0xf]
        %v910 = vld [vmem:[%s888 + $0x54] sm:$0xf]
        %v911 = vld [vmem:[%s888 + $0x58] sm:$0xf]
        %v912 = vld [vmem:[%s888 + $0x5c] sm:$0xf]
        %v913 = vld [vmem:[%s888 + $0x60] sm:$0xf]
        %v914 = vld [vmem:[%s888 + $0x64] sm:$0xf]
        %v915 = vld [vmem:[%s888 + $0x68] sm:$0xf]
        %v916 = vld [vmem:[%s888 + $0x6c] sm:$0xf]
        %v917 = vld [vmem:[%s888 + $0x70] sm:$0xf]
        %v918 = vld [vmem:[%s888 + $0x74] sm:$0xf]
        %v919 = vld [vmem:[%s888 + $0x78] sm:$0xf]
        %v920 = vld [vmem:[%s888 + $0x7c] sm:$0xf]
        %v921 = vld [vmem:[%s888 + $0x80] sm:$0xf]
        %v922 = vld [vmem:[%s888 + $0x84] sm:$0xf]
        %v923 = vld [vmem:[%s888 + $0x88] sm:$0xf]
        %v924 = vld [vmem:[%s888 + $0x8c] sm:$0xf]
        %v925 = vld [vmem:[%s888 + $0x90] sm:$0xf]
        %v926 = vld [vmem:[%s888 + $0x94] sm:$0xf]
        %v927 = vld [vmem:[%s888 + $0x98] sm:$0xf]
        %v928 = vld [vmem:[%s888 + $0x9c] sm:$0xf]
        %v929 = vld [vmem:[%s888 + $0xa0] sm:$0xf]
        %v930 = vld [vmem:[%s888 + $0xa4] sm:$0xf]
        %v931 = vld [vmem:[%s888 + $0xa8] sm:$0xf]
        %v932 = vld [vmem:[%s888 + $0xac] sm:$0xf]
        %v933 = vld [vmem:[%s888 + $0xb0] sm:$0xf]
        %v934 = vld [vmem:[%s888 + $0xb4] sm:$0xf]
        %v935 = vld [vmem:[%s888 + $0xb8] sm:$0xf]
        %v936 = vld [vmem:[%s888 + $0xbc] sm:$0xf]
        %v937 = vld [vmem:[%s888 + $0xc0] sm:$0xf]
        %v938 = vld [vmem:[%s888 + $0xc4] sm:$0xf]
        %v939 = vld [vmem:[%s888 + $0xc8] sm:$0xf]
        %v940 = vld [vmem:[%s888 + $0xcc] sm:$0xf]
        %v941 = vld [vmem:[%s888 + $0xd0] sm:$0xf]
        %v942 = vld [vmem:[%s888 + $0xd4] sm:$0xf]
        %v943 = vld [vmem:[%s888 + $0xd8] sm:$0xf]
        %v944 = vld [vmem:[%s888 + $0xdc] sm:$0xf]
        %v945 = vld [vmem:[%s888 + $0xe0] sm:$0xf]
        %v946 = vld [vmem:[%s888 + $0xe4] sm:$0xf]
        %v947 = vld [vmem:[%s888 + $0xe8] sm:$0xf]
        %v948 = vld [vmem:[%s888 + $0xec] sm:$0xf]
        %v949 = vld [vmem:[%s888 + $0xf0] sm:$0xf]
        %v950 = vld [vmem:[%s888 + $0xf4] sm:$0xf]
        %v951 = vld [vmem:[%s888 + $0xf8] sm:$0xf]
        %v952 = vld [vmem:[%s888 + $0xfc] sm:$0xf]
        %v953 = vld [vmem:[%s888 + $0x100] sm:$0xf]
        %v954 = vld [vmem:[%s888 + $0x104] sm:$0xf]
        %v955 = vld [vmem:[%s888 + $0x108] sm:$0xf]
        %v956 = vld [vmem:[%s888 + $0x10c] sm:$0xf]
        %v957 = vld [vmem:[%s888 + $0x110] sm:$0xf]
        %v958 = vld [vmem:[%s888 + $0x114] sm:$0xf]
        %v959 = vld [vmem:[%s888 + $0x118] sm:$0xf]
        %v960 = vld [vmem:[%s888 + $0x11c] sm:$0xf]
        %v961 = vld [vmem:[%s888 + $0x120] sm:$0xf]
        %v962 = vld [vmem:[%s888 + $0x124] sm:$0xf]
        %v963 = vld [vmem:[%s888 + $0x128] sm:$0xf]
        %v964 = vld [vmem:[%s888 + $0x12c] sm:$0xf]
        %v965 = vld [vmem:[%s888 + $0x130] sm:$0xf]
        %v966 = vld [vmem:[%s888 + $0x134] sm:$0xf]
        %v967 = vld [vmem:[%s888 + $0x138] sm:$0xf]
        %v968 = vld [vmem:[%s888 + $0x13c] sm:$0xf]
        %s969 = scalar_lea.vmem %s2, 1
        %v970 = vld [vmem:[%s969] sm:$0x1]
        %v972 = vlaneseq
        %v973 = vshrl.u32 %v972, 7
        %v974 = vsub.s32 0, %v973
        %v975 = vrot.slane %v970, %v974
        %v977 = vrot.slane %v836, 1
        %v978 = vrot.slane %v837, 1
        %v979 = vsel %vm255, %v977, %v978
        %v980 = vrot.slane %v852, 1
        %v981 = vrot.slane %v855, 1
        %v982 = vsel %vm255, %v980, %v981
        %v983 = vrot.slane %v861, 1
        %v984 = vrot.slane %v860, 1
        %v985 = vsel %vm255, %v983, %v984
        %v986 = vrot.slane %v881, 1
        %v987 = vrot.slane %v880, 1
        %v988 = vsel %vm255, %v986, %v987
        %v989 = vrot.slane %v887, 1
        %v990 = vrot.slane %v886, 1
        %v991 = vsel %vm255, %v989, %v990
        %v1082 = vunpack.c.l.b16 %v889
        %v1083 = vunpack.c.l.b16 %v890
        %v1084 = vunpack.c.l.b16 %v891
        %v1085 = vunpack.c.l.b16 %v892
        %v1086 = vunpack.c.l.b16 %v893
        %v1087 = vunpack.c.l.b16 %v894
        %v1088 = vunpack.c.l.b16 %v895
        %v1089 = vunpack.c.l.b16 %v896
        %v1090 = vunpack.c.l.b16 %v897
        %v1091 = vunpack.c.l.b16 %v898
        %v1092 = vunpack.c.l.b16 %v899
        %v1093 = vunpack.c.l.b16 %v900
        %v1094 = vunpack.c.l.b16 %v901
        %v1095 = vunpack.c.l.b16 %v902
        %v1096 = vunpack.c.l.b16 %v903
        %v1097 = vunpack.c.l.b16 %v904
        %v1098 = vunpack.c.l.b16 %v905
        %v1099 = vunpack.c.l.b16 %v906
        %v1100 = vunpack.c.l.b16 %v907
        %v1101 = vunpack.c.l.b16 %v908
        %v1102 = vunpack.c.l.b16 %v909
        %v1103 = vunpack.c.l.b16 %v910
        %v1104 = vunpack.c.l.b16 %v911
        %v1105 = vunpack.c.l.b16 %v912
        %v1106 = vunpack.c.l.b16 %v913
        %v1107 = vunpack.c.l.b16 %v914
        %v1108 = vunpack.c.l.b16 %v915
        %v1109 = vunpack.c.l.b16 %v916
        %v1110 = vunpack.c.l.b16 %v917
        %v1111 = vunpack.c.l.b16 %v918
        %v1112 = vunpack.c.l.b16 %v919
        %v1113 = vunpack.c.l.b16 %v920
        %v1114 = vunpack.c.l.b16 %v921
        %v1115 = vunpack.c.l.b16 %v922
        %v1116 = vunpack.c.l.b16 %v923
        %v1117 = vunpack.c.l.b16 %v924
        %v1118 = vunpack.c.l.b16 %v925
        %v1119 = vunpack.c.l.b16 %v926
        %v1120 = vunpack.c.l.b16 %v927
        %v1121 = vunpack.c.l.b16 %v928
        %v1122 = vunpack.c.l.b16 %v929
        %v1123 = vunpack.c.l.b16 %v930
        %v1124 = vunpack.c.l.b16 %v931
        %v1125 = vunpack.c.l.b16 %v932
        %v1126 = vunpack.c.l.b16 %v933
        %v1127 = vunpack.c.l.b16 %v934
        %v1128 = vunpack.c.l.b16 %v935
        %v1129 = vunpack.c.l.b16 %v936
        %v1130 = vunpack.c.l.b16 %v937
        %v1131 = vunpack.c.l.b16 %v938
        %v1132 = vunpack.c.l.b16 %v939
        %v1133 = vunpack.c.l.b16 %v940
        %v1134 = vunpack.c.l.b16 %v941
        %v1135 = vunpack.c.l.b16 %v942
        %v1136 = vunpack.c.l.b16 %v943
        %v1137 = vunpack.c.l.b16 %v944
        %v1138 = vunpack.c.l.b16 %v945
        %v1139 = vunpack.c.l.b16 %v946
        %v1140 = vunpack.c.l.b16 %v947
        %v1141 = vunpack.c.l.b16 %v948
        %v1142 = vunpack.c.l.b16 %v949
        %v1143 = vunpack.c.l.b16 %v950
        %v1144 = vunpack.c.l.b16 %v951
        %v1145 = vunpack.c.l.b16 %v952
        %v1146 = vunpack.c.l.b16 %v953
        %v1147 = vunpack.c.l.b16 %v954
        %v1148 = vunpack.c.l.b16 %v955
        %v1149 = vunpack.c.l.b16 %v956
        %v1150 = vunpack.c.l.b16 %v957
        %v1151 = vunpack.c.l.b16 %v958
        %v1152 = vunpack.c.l.b16 %v959
        %v1153 = vunpack.c.l.b16 %v960
        %v1154 = vunpack.c.l.b16 %v961
        %v1155 = vunpack.c.l.b16 %v962
        %v1156 = vunpack.c.l.b16 %v963
        %v1157 = vunpack.c.l.b16 %v964
        %v1158 = vunpack.c.l.b16 %v965
        %v1159 = vunpack.c.l.b16 %v966
        %v1160 = vunpack.c.l.b16 %v967
        %v1161 = vunpack.c.l.b16 %v968
        %v1162 = vpack.c.b16 %v1083, %v1082
        %v1163 = vpack.c.b16 %v1085, %v1084
        %v1164 = vpack.c.b16 %v1087, %v1086
        %v1165 = vpack.c.b16 %v1089, %v1088
        %v1166 = vpack.c.b16 %v1091, %v1090
        %v1167 = vpack.c.b16 %v1093, %v1092
        %v1168 = vpack.c.b16 %v1095, %v1094
        %v1169 = vpack.c.b16 %v1097, %v1096
        %v1170 = vpack.c.b16 %v1099, %v1098
        %v1171 = vpack.c.b16 %v1101, %v1100
        %v1172 = vpack.c.b16 %v1103, %v1102
        %v1173 = vpack.c.b16 %v1105, %v1104
        %v1174 = vpack.c.b16 %v1107, %v1106
        %v1175 = vpack.c.b16 %v1109, %v1108
        %v1176 = vpack.c.b16 %v1111, %v1110
        %v1177 = vpack.c.b16 %v1113, %v1112
        %v1178 = vpack.c.b16 %v1115, %v1114
        %v1179 = vpack.c.b16 %v1117, %v1116
        %v1180 = vpack.c.b16 %v1119, %v1118
        %v1181 = vpack.c.b16 %v1121, %v1120
        %v1182 = vpack.c.b16 %v1123, %v1122
        %v1183 = vpack.c.b16 %v1125, %v1124
        %v1184 = vpack.c.b16 %v1127, %v1126
        %v1185 = vpack.c.b16 %v1129, %v1128
        %v1186 = vpack.c.b16 %v1131, %v1130
        %v1187 = vpack.c.b16 %v1133, %v1132
        %v1188 = vpack.c.b16 %v1135, %v1134
        %v1189 = vpack.c.b16 %v1137, %v1136
        %v1190 = vpack.c.b16 %v1139, %v1138
        %v1191 = vpack.c.b16 %v1141, %v1140
        %v1192 = vpack.c.b16 %v1143, %v1142
        %v1193 = vpack.c.b16 %v1145, %v1144
        %v1194 = vpack.c.b16 %v1147, %v1146
        %v1195 = vpack.c.b16 %v1149, %v1148
        %v1196 = vpack.c.b16 %v1151, %v1150
        %v1197 = vpack.c.b16 %v1153, %v1152
        %v1198 = vpack.c.b16 %v1155, %v1154
        %v1199 = vpack.c.b16 %v1157, %v1156
        %v1200 = vpack.c.b16 %v1159, %v1158
        %v1201 = vpack.c.b16 %v1161, %v1160
        %1242 = vmatprep.subr.bf16.mxu0 0
        %1243 = vmatpush1.bf16.msra.mxu0 %v1169
        %1244 = vmatprep.subr.bf16.mxu0 0
        %1245 = vmatpush1.bf16.msra.mxu0 %v1168
        %1246 = vmatprep.subr.bf16.mxu0 0
        %1247 = vmatpush1.bf16.msra.mxu0 %v1167
        %1248 = vmatprep.subr.bf16.mxu0 0
        %1249 = vmatpush1.bf16.msra.mxu0 %v1166
        %1250 = vmatprep.subr.bf16.mxu0 0
        %1251 = vmatpush1.bf16.msra.mxu0 %v1165
        %1252 = vmatprep.subr.bf16.mxu0 0
        %1253 = vmatpush1.bf16.msra.mxu0 %v1164
        %1254 = vmatprep.subr.bf16.mxu0 0
        %1255 = vmatpush1.bf16.msra.mxu0 %v1163
        %1256 = vmatprep.subr.bf16.mxu0 0
        %1257 = vmatpush1.bf16.msra.mxu0 %v1162
        %1258 = vmatprep.subr.bf16.mxu0 0
        %1259 = vmatpush2.bf16.msra.mxu0 %v1177
        %1260 = vmatprep.subr.bf16.mxu0 0
        %1261 = vmatpush2.bf16.msra.mxu0 %v1176
        %1262 = vmatprep.subr.bf16.mxu0 0
        %1263 = vmatpush2.bf16.msra.mxu0 %v1175
        %1264 = vmatprep.subr.bf16.mxu0 0
        %1265 = vmatpush2.bf16.msra.mxu0 %v1174
        %1266 = vmatprep.subr.bf16.mxu0 0
        %1267 = vmatpush2.bf16.msra.mxu0 %v1173
        %1268 = vmatprep.subr.bf16.mxu0 0
        %1269 = vmatpush2.bf16.msra.mxu0 %v1172
        %1270 = vmatprep.subr.bf16.mxu0 0
        %1271 = vmatpush2.bf16.msra.mxu0 %v1171
        %1272 = vmatprep.subr.bf16.mxu0 0
        %1273 = vmatpush2.bf16.msra.mxu0 %v1170
        %1274 = vmatprep.mubr.bf16.mxu0 %v982
        %1275 = vmatmul.mubr.bf16.gmra.mxu0 %v979
        %v1276 = vpop.f32.mrf.mxu0
        %v1277 = vadd.f32 %v975, %v1276
        %v1278 = vpop.f32.mrf.mxu0
        %v1279 = vpop.f32.mrf.mxu0
        %v1280 = vadd.f32 %v975, %v1279
        %v1281 = vpop.f32.mrf.mxu0
        %1282 = vmatprep.mubr.bf16.mxu0 %v981
        %1283 = vmatmul.mubr.bf16.gmra.mxu0 %v978
        %v1284 = vpop.f32.mrf.mxu0
        %v1285 = vadd.f32 %v975, %v1284
        %v1286 = vpop.f32.mrf.mxu0
        %v1287 = vpop.f32.mrf.mxu0
        %v1288 = vpop.f32.mrf.mxu0
        %1289 = vdwg.mxu0
        %1290 = vmatprep.subr.bf16.mxu0 0
        %1291 = vmatpush1.bf16.msra.mxu0 %v1185
        %1292 = vmatprep.subr.bf16.mxu0 0
        %1293 = vmatpush1.bf16.msra.mxu0 %v1184
        %1294 = vmatprep.subr.bf16.mxu0 0
        %1295 = vmatpush1.bf16.msra.mxu0 %v1183
        %1296 = vmatprep.subr.bf16.mxu0 0
        %1297 = vmatpush1.bf16.msra.mxu0 %v1182
        %1298 = vmatprep.subr.bf16.mxu0 0
        %1299 = vmatpush1.bf16.msra.mxu0 %v1181
        %1300 = vmatprep.subr.bf16.mxu0 0
        %1301 = vmatpush1.bf16.msra.mxu0 %v1180
        %1302 = vmatprep.subr.bf16.mxu0 0
        %1303 = vmatpush1.bf16.msra.mxu0 %v1179
        %1304 = vmatprep.subr.bf16.mxu0 0
        %1305 = vmatpush1.bf16.msra.mxu0 %v1178
        %1306 = vmatprep.subr.bf16.mxu0 0
        %1307 = vmatpush2.bf16.msra.mxu0 %v1193
        %1308 = vmatprep.subr.bf16.mxu0 0
        %1309 = vmatpush2.bf16.msra.mxu0 %v1192
        %1310 = vmatprep.subr.bf16.mxu0 0
        %1311 = vmatpush2.bf16.msra.mxu0 %v1191
        %1312 = vmatprep.subr.bf16.mxu0 0
        %1313 = vmatpush2.bf16.msra.mxu0 %v1190
        %1314 = vmatprep.subr.bf16.mxu0 0
        %1315 = vmatpush2.bf16.msra.mxu0 %v1189
        %1316 = vmatprep.subr.bf16.mxu0 0
        %1317 = vmatpush2.bf16.msra.mxu0 %v1188
        %1318 = vmatprep.subr.bf16.mxu0 0
        %1319 = vmatpush2.bf16.msra.mxu0 %v1187
        %1320 = vmatprep.subr.bf16.mxu0 0
        %1321 = vmatpush2.bf16.msra.mxu0 %v1186
        %1322 = vmatprep.mubr.bf16.mxu0 %v988
        %1323 = vmatmul.mubr.bf16.gmra.mxu0 %v985
        %v1324 = vpop.f32.mrf.mxu0
        %v1325 = vadd.f32 %v1277, %v1324
        %v1326 = vpop.f32.mrf.mxu0
        %v1327 = vpop.f32.mrf.mxu0
        %v1328 = vadd.f32 %v1280, %v1327
        %v1329 = vpop.f32.mrf.mxu0
        %1330 = vmatprep.mubr.bf16.mxu0 %v987
        %1331 = vmatmul.mubr.bf16.gmra.mxu0 %v984
        %v1332 = vpop.f32.mrf.mxu0
        %v1333 = vadd.f32 %v1285, %v1332
        %v1334 = vpop.f32.mrf.mxu0
        %v1335 = vpop.f32.mrf.mxu0
        %v1336 = vpop.f32.mrf.mxu0
        %1337 = vdwg.mxu0
        %1338 = vmatprep.subr.bf16.mxu0 0
        %1339 = vmatpush1.bf16.msra.mxu0 %v1201
        %1340 = vmatprep.subr.bf16.mxu0 0
        %1341 = vmatpush1.bf16.msra.mxu0 %v1200
        %1342 = vmatprep.subr.bf16.mxu0 0
        %1343 = vmatpush1.bf16.msra.mxu0 %v1199
        %1344 = vmatprep.subr.bf16.mxu0 0
        %1345 = vmatpush1.bf16.msra.mxu0 %v1198
        %1346 = vmatprep.subr.bf16.mxu0 0
        %1347 = vmatpush1.bf16.msra.mxu0 %v1197
        %1348 = vmatprep.subr.bf16.mxu0 0
        %1349 = vmatpush1.bf16.msra.mxu0 %v1196
        %1350 = vmatprep.subr.bf16.mxu0 0
        %1351 = vmatpush1.bf16.msra.mxu0 %v1195
        %1352 = vmatprep.subr.bf16.mxu0 0
        %1353 = vmatpush1.bf16.msra.mxu0 %v1194
        %1354 = vmatprep.subr.bf16.mxu0 0
        %1355 = vmatpush2.bf16.msra.mxu0 0
        %1356 = vmatprep.subr.bf16.mxu0 0
        %1357 = vmatpush2.bf16.msra.mxu0 0
        %1358 = vmatprep.subr.bf16.mxu0 0
        %1359 = vmatpush2.bf16.msra.mxu0 0
        %1360 = vmatprep.subr.bf16.mxu0 0
        %1361 = vmatpush2.bf16.msra.mxu0 0
        %1362 = vmatprep.subr.bf16.mxu0 0
        %1363 = vmatpush2.bf16.msra.mxu0 0
        %1364 = vmatprep.subr.bf16.mxu0 0
        %1365 = vmatpush2.bf16.msra.mxu0 0
        %1366 = vmatprep.subr.bf16.mxu0 0
        %1367 = vmatpush2.bf16.msra.mxu0 0
        %1368 = vmatprep.subr.bf16.mxu0 0
        %1369 = vmatpush2.bf16.msra.mxu0 0
        %1370 = vmatprep.mubr.bf16.mxu0 0
        %1371 = vmatmul.mubr.bf16.gmra.mxu0 %v991
        %v1372 = vpop.f32.mrf.mxu0
        %v1373 = vadd.f32 %v1325, %v1372
        %v1374 = vpop.f32.mrf.mxu0
        %v1375 = vpop.f32.mrf.mxu0
        %v1376 = vadd.f32 %v1328, %v1375
        %v1377 = vpop.f32.mrf.mxu0
        %1378 = vmatprep.mubr.bf16.mxu0 0
        %1379 = vmatmul.mubr.bf16.gmra.mxu0 %v990
        %v1380 = vpop.f32.mrf.mxu0
        %v1381 = vadd.f32 %v1333, %v1380
        %v1382 = vpop.f32.mrf.mxu0
        %v1383 = vpop.f32.mrf.mxu0
        %v1384 = vpop.f32.mrf.mxu0
        %1385 = vdwg.mxu0
        %v1386 = vtanh.pop %v1373
        %v1387 = vtanh.pop %v1376
        %v1388 = vtanh.pop %v1381
        %s1389 = sadd.s32 %s213, 4294967290
        %v1390 = vstv %s1389
        %v1391 = vadd.s32 %v1390, %v769
        %v1392 = vadd.s32 %v1390, %v770
        %v1393 = vadd.s32 %v1390, %v771
        %vm1394 = vcmp.ge.s32.totalorder %v1391, 0
        %vm1395 = vcmp.ge.s32.totalorder %v1392, 0
        %vm1396 = vcmp.ge.s32.totalorder %v1393, 0
        %vm1397 = vcmp.lt.s32.totalorder %v1391, 8
        %vm1398 = vcmp.lt.s32.totalorder %v1392, 8
        %vm1399 = vcmp.lt.s32.totalorder %v1393, 8
        %vm1400 = vmand %vm1394, %vm1397
        %vm1401 = vmand %vm1395, %vm1398
        %vm1402 = vmand %vm1396, %vm1399
        %v1403 = vsel %vm1400, 1, 0
        %v1404 = vsel %vm1401, 1, 0
        %v1405 = vsel %vm1402, 1, 0
        %v1406 = vcvt.s32.f32 %v1403
        %v1407 = vcvt.s32.f32 %v1404
        %v1408 = vcvt.s32.f32 %v1405
        %v1409 = vmul.f32 %v1386, %v1406
        %v1410 = vmul.f32 %v1387, %v1407
        %v1411 = vmul.f32 %v1388, %v1408
        %v1412 = vpack.c.bf16 %v1410, %v1409
        %v1413 = vpack.c.bf16 %v1411, %v1411
        %v1416 = vunpack.c.l.b16 %v1412
        %v1417 = vunpack.c.h.b16 %v1412
        %v1418 = vunpack.c.l.b16 %v1413
        %v1419 = vpack.c.b16 %v1416, %v1416
        %v1420 = vpack.c.b16 %v1417, %v1417
        %v1421 = vpack.c.b16 %v1418, %v1418
        %vm1422 = vcmask 1041408
        %vm1423 = vcmask 1045508
        %vm1424 = vmor %vm1422, %vm1423
        %v1425 = vrot.slane %v1419, 6
        %v1426 = vrot.slane %v1425, 4
        %v1427 = vrot.slane %v1420, 6
        %v1428 = vsel %vm1424, %v1426, %v1427
        %v1429 = vrot.slane %v1427, 4
        %v1430 = vrot.slane %v1421, 6
        %v1431 = vsel %vm1424, %v1429, %v1430
        %1435 = vst [vmem:[#allocation3] sm:$0xc] %v1425
        %1436 = vst [vmem:[#allocation3 + $0x4] sm:$0xf] %v1428
        %1437 = vst [vmem:[#allocation3 + $0x8] sm:$0xf] %v1431
        %v1438 = vld [vmem:[#allocation3] sm:$0xc]
        %v1439 = vld [vmem:[#allocation3 + $0x4] sm:$0xf]
        %v1440 = vld [vmem:[#allocation3 + $0x8] sm:$0x3]
        %v1441 = vld [vmem:[#allocation3 + $0x8] sm:$0x7]
        %v1442 = vld [vmem:[#allocation3] sm:$0x8]
        %v1443 = vld [vmem:[#allocation3 + $0x8] sm:$0xf]
        %v1447 = vunpack.c.l.b16 %v1438
        %v1448 = vunpack.c.l.b16 %v1439
        %v1449 = vunpack.c.l.b16 %v1440
        %v1450 = vpack.c.b16 %v1448, %v1447
        %v1451 = vpack.c.b16 %v1449, %v1449
        %v1453 = vunpack.c.l.b16 %v1441
        %v1454 = vpack.c.b16 %v1453, %v1453
        %v1456 = vshrl.u32 %v1450, 16
        %v1458 = vshll.u32 %v1450, 16
        %v1460 = vrot.slane %v1458, 1
        %v1461 = vor.u32 %v1456, %v1460
        %v1463 = vshll.u32 %v1454, 16
        %v1465 = vrot.slane %v1463, 1
        %v1466 = vsel %vm234, %v1461, %v1465
        %v1467 = vshrl.u32 %v1454, 16
        %v1469 = vor.u32 %v1467, %v1465
        %v1471 = vunpack.c.l.b16 %v1442
        %v1472 = vpack.c.b16 %v1448, %v1471
        %v1473 = vrot.slane %v1472, 1
        %v1474 = vrot.slane %v1454, 1
        %v1475 = vsel %vm255, %v1473, %v1474
        %v1477 = vunpack.c.l.b16 %v1443
        %v1478 = vpack.c.b16 %v1477, %v1477
        %v1480 = vshrl.u32 %v1472, 16
        %v1482 = vrot.slane %v1480, 1
        %v1483 = vshll.u32 %v1472, 16
        %v1485 = vrot.slane %v1483, 2
        %v1486 = vor.u32 %v1482, %v1485
        %v1488 = vshrl.u32 %v1478, 16
        %v1490 = vrot.slane %v1488, 1
        %v1491 = vshll.u32 %v1478, 16
        %v1493 = vrot.slane %v1491, 2
        %v1494 = vor.u32 %v1490, %v1493
        %v1495 = vsel %vm264, %v1486, %v1494
        %v1496 = vpack.c.b16 %v1477, %v1448
        %v1497 = vrot.slane %v1496, 6
        %s1498 = scalar_lea.vmem [#allocation4], 640
        %v1499 = vld [vmem:[%s1498] sm:$0xf]
        %v1500 = vld [vmem:[%s1498 + $0x4] sm:$0xf]
        %v1501 = vld [vmem:[%s1498 + $0x8] sm:$0xf]
        %v1502 = vld [vmem:[%s1498 + $0xc] sm:$0xf]
        %v1503 = vld [vmem:[%s1498 + $0x10] sm:$0xf]
        %v1504 = vld [vmem:[%s1498 + $0x14] sm:$0xf]
        %v1505 = vld [vmem:[%s1498 + $0x18] sm:$0xf]
        %v1506 = vld [vmem:[%s1498 + $0x1c] sm:$0xf]
        %v1507 = vld [vmem:[%s1498 + $0x20] sm:$0xf]
        %v1508 = vld [vmem:[%s1498 + $0x24] sm:$0xf]
        %v1509 = vld [vmem:[%s1498 + $0x28] sm:$0xf]
        %v1510 = vld [vmem:[%s1498 + $0x2c] sm:$0xf]
        %v1511 = vld [vmem:[%s1498 + $0x30] sm:$0xf]
        %v1512 = vld [vmem:[%s1498 + $0x34] sm:$0xf]
        %v1513 = vld [vmem:[%s1498 + $0x38] sm:$0xf]
        %v1514 = vld [vmem:[%s1498 + $0x3c] sm:$0xf]
        %v1515 = vld [vmem:[%s1498 + $0x40] sm:$0xf]
        %v1516 = vld [vmem:[%s1498 + $0x44] sm:$0xf]
        %v1517 = vld [vmem:[%s1498 + $0x48] sm:$0xf]
        %v1518 = vld [vmem:[%s1498 + $0x4c] sm:$0xf]
        %v1519 = vld [vmem:[%s1498 + $0x50] sm:$0xf]
        %v1520 = vld [vmem:[%s1498 + $0x54] sm:$0xf]
        %v1521 = vld [vmem:[%s1498 + $0x58] sm:$0xf]
        %v1522 = vld [vmem:[%s1498 + $0x5c] sm:$0xf]
        %v1523 = vld [vmem:[%s1498 + $0x60] sm:$0xf]
        %v1524 = vld [vmem:[%s1498 + $0x64] sm:$0xf]
        %v1525 = vld [vmem:[%s1498 + $0x68] sm:$0xf]
        %v1526 = vld [vmem:[%s1498 + $0x6c] sm:$0xf]
        %v1527 = vld [vmem:[%s1498 + $0x70] sm:$0xf]
        %v1528 = vld [vmem:[%s1498 + $0x74] sm:$0xf]
        %v1529 = vld [vmem:[%s1498 + $0x78] sm:$0xf]
        %v1530 = vld [vmem:[%s1498 + $0x7c] sm:$0xf]
        %v1531 = vld [vmem:[%s1498 + $0x80] sm:$0xf]
        %v1532 = vld [vmem:[%s1498 + $0x84] sm:$0xf]
        %v1533 = vld [vmem:[%s1498 + $0x88] sm:$0xf]
        %v1534 = vld [vmem:[%s1498 + $0x8c] sm:$0xf]
        %v1535 = vld [vmem:[%s1498 + $0x90] sm:$0xf]
        %v1536 = vld [vmem:[%s1498 + $0x94] sm:$0xf]
        %v1537 = vld [vmem:[%s1498 + $0x98] sm:$0xf]
        %v1538 = vld [vmem:[%s1498 + $0x9c] sm:$0xf]
        %v1539 = vld [vmem:[%s1498 + $0xa0] sm:$0xf]
        %v1540 = vld [vmem:[%s1498 + $0xa4] sm:$0xf]
        %v1541 = vld [vmem:[%s1498 + $0xa8] sm:$0xf]
        %v1542 = vld [vmem:[%s1498 + $0xac] sm:$0xf]
        %v1543 = vld [vmem:[%s1498 + $0xb0] sm:$0xf]
        %v1544 = vld [vmem:[%s1498 + $0xb4] sm:$0xf]
        %v1545 = vld [vmem:[%s1498 + $0xb8] sm:$0xf]
        %v1546 = vld [vmem:[%s1498 + $0xbc] sm:$0xf]
        %v1547 = vld [vmem:[%s1498 + $0xc0] sm:$0xf]
        %v1548 = vld [vmem:[%s1498 + $0xc4] sm:$0xf]
        %v1549 = vld [vmem:[%s1498 + $0xc8] sm:$0xf]
        %v1550 = vld [vmem:[%s1498 + $0xcc] sm:$0xf]
        %v1551 = vld [vmem:[%s1498 + $0xd0] sm:$0xf]
        %v1552 = vld [vmem:[%s1498 + $0xd4] sm:$0xf]
        %v1553 = vld [vmem:[%s1498 + $0xd8] sm:$0xf]
        %v1554 = vld [vmem:[%s1498 + $0xdc] sm:$0xf]
        %v1555 = vld [vmem:[%s1498 + $0xe0] sm:$0xf]
        %v1556 = vld [vmem:[%s1498 + $0xe4] sm:$0xf]
        %v1557 = vld [vmem:[%s1498 + $0xe8] sm:$0xf]
        %v1558 = vld [vmem:[%s1498 + $0xec] sm:$0xf]
        %v1559 = vld [vmem:[%s1498 + $0xf0] sm:$0xf]
        %v1560 = vld [vmem:[%s1498 + $0xf4] sm:$0xf]
        %v1561 = vld [vmem:[%s1498 + $0xf8] sm:$0xf]
        %v1562 = vld [vmem:[%s1498 + $0xfc] sm:$0xf]
        %v1563 = vld [vmem:[%s1498 + $0x100] sm:$0xf]
        %v1564 = vld [vmem:[%s1498 + $0x104] sm:$0xf]
        %v1565 = vld [vmem:[%s1498 + $0x108] sm:$0xf]
        %v1566 = vld [vmem:[%s1498 + $0x10c] sm:$0xf]
        %v1567 = vld [vmem:[%s1498 + $0x110] sm:$0xf]
        %v1568 = vld [vmem:[%s1498 + $0x114] sm:$0xf]
        %v1569 = vld [vmem:[%s1498 + $0x118] sm:$0xf]
        %v1570 = vld [vmem:[%s1498 + $0x11c] sm:$0xf]
        %v1571 = vld [vmem:[%s1498 + $0x120] sm:$0xf]
        %v1572 = vld [vmem:[%s1498 + $0x124] sm:$0xf]
        %v1573 = vld [vmem:[%s1498 + $0x128] sm:$0xf]
        %v1574 = vld [vmem:[%s1498 + $0x12c] sm:$0xf]
        %v1575 = vld [vmem:[%s1498 + $0x130] sm:$0xf]
        %v1576 = vld [vmem:[%s1498 + $0x134] sm:$0xf]
        %v1577 = vld [vmem:[%s1498 + $0x138] sm:$0xf]
        %v1578 = vld [vmem:[%s1498 + $0x13c] sm:$0xf]
        %s1579 = scalar_lea.vmem %s2, 2
        %v1580 = vld [vmem:[%s1579] sm:$0x1]
        %v1582 = vlaneseq
        %v1583 = vshrl.u32 %v1582, 7
        %v1584 = vsub.s32 0, %v1583
        %v1585 = vrot.slane %v1580, %v1584
        %v1587 = vrot.slane %v1450, 2
        %v1588 = vrot.slane %v1451, 2
        %v1589 = vsel %vm287, %v1587, %v1588
        %v1590 = vrot.slane %v1466, 2
        %v1591 = vrot.slane %v1469, 2
        %v1592 = vsel %vm287, %v1590, %v1591
        %v1593 = vrot.slane %v1475, 2
        %v1594 = vrot.slane %v1474, 2
        %v1595 = vsel %vm287, %v1593, %v1594
        %v1596 = vrot.slane %v1495, 2
        %v1597 = vrot.slane %v1494, 2
        %v1598 = vsel %vm287, %v1596, %v1597
        %v1599 = vrot.slane %v1497, 2
        %v1600 = vsel %vm287, %v1599, %v1599
        %v1686 = vunpack.c.l.b16 %v1499
        %v1687 = vunpack.c.l.b16 %v1500
        %v1688 = vunpack.c.l.b16 %v1501
        %v1689 = vunpack.c.l.b16 %v1502
        %v1690 = vunpack.c.l.b16 %v1503
        %v1691 = vunpack.c.l.b16 %v1504
        %v1692 = vunpack.c.l.b16 %v1505
        %v1693 = vunpack.c.l.b16 %v1506
        %v1694 = vunpack.c.l.b16 %v1507
        %v1695 = vunpack.c.l.b16 %v1508
        %v1696 = vunpack.c.l.b16 %v1509
        %v1697 = vunpack.c.l.b16 %v1510
        %v1698 = vunpack.c.l.b16 %v1511
        %v1699 = vunpack.c.l.b16 %v1512
        %v1700 = vunpack.c.l.b16 %v1513
        %v1701 = vunpack.c.l.b16 %v1514
        %v1702 = vunpack.c.l.b16 %v1515
        %v1703 = vunpack.c.l.b16 %v1516
        %v1704 = vunpack.c.l.b16 %v1517
        %v1705 = vunpack.c.l.b16 %v1518
        %v1706 = vunpack.c.l.b16 %v1519
        %v1707 = vunpack.c.l.b16 %v1520
        %v1708 = vunpack.c.l.b16 %v1521
        %v1709 = vunpack.c.l.b16 %v1522
        %v1710 = vunpack.c.l.b16 %v1523
        %v1711 = vunpack.c.l.b16 %v1524
        %v1712 = vunpack.c.l.b16 %v1525
        %v1713 = vunpack.c.l.b16 %v1526
        %v1714 = vunpack.c.l.b16 %v1527
        %v1715 = vunpack.c.l.b16 %v1528
        %v1716 = vunpack.c.l.b16 %v1529
        %v1717 = vunpack.c.l.b16 %v1530
        %v1718 = vunpack.c.l.b16 %v1531
        %v1719 = vunpack.c.l.b16 %v1532
        %v1720 = vunpack.c.l.b16 %v1533
        %v1721 = vunpack.c.l.b16 %v1534
        %v1722 = vunpack.c.l.b16 %v1535
        %v1723 = vunpack.c.l.b16 %v1536
        %v1724 = vunpack.c.l.b16 %v1537
        %v1725 = vunpack.c.l.b16 %v1538
        %v1726 = vunpack.c.l.b16 %v1539
        %v1727 = vunpack.c.l.b16 %v1540
        %v1728 = vunpack.c.l.b16 %v1541
        %v1729 = vunpack.c.l.b16 %v1542
        %v1730 = vunpack.c.l.b16 %v1543
        %v1731 = vunpack.c.l.b16 %v1544
        %v1732 = vunpack.c.l.b16 %v1545
        %v1733 = vunpack.c.l.b16 %v1546
        %v1734 = vunpack.c.l.b16 %v1547
        %v1735 = vunpack.c.l.b16 %v1548
        %v1736 = vunpack.c.l.b16 %v1549
        %v1737 = vunpack.c.l.b16 %v1550
        %v1738 = vunpack.c.l.b16 %v1551
        %v1739 = vunpack.c.l.b16 %v1552
        %v1740 = vunpack.c.l.b16 %v1553
        %v1741 = vunpack.c.l.b16 %v1554
        %v1742 = vunpack.c.l.b16 %v1555
        %v1743 = vunpack.c.l.b16 %v1556
        %v1744 = vunpack.c.l.b16 %v1557
        %v1745 = vunpack.c.l.b16 %v1558
        %v1746 = vunpack.c.l.b16 %v1559
        %v1747 = vunpack.c.l.b16 %v1560
        %v1748 = vunpack.c.l.b16 %v1561
        %v1749 = vunpack.c.l.b16 %v1562
        %v1750 = vunpack.c.l.b16 %v1563
        %v1751 = vunpack.c.l.b16 %v1564
        %v1752 = vunpack.c.l.b16 %v1565
        %v1753 = vunpack.c.l.b16 %v1566
        %v1754 = vunpack.c.l.b16 %v1567
        %v1755 = vunpack.c.l.b16 %v1568
        %v1756 = vunpack.c.l.b16 %v1569
        %v1757 = vunpack.c.l.b16 %v1570
        %v1758 = vunpack.c.l.b16 %v1571
        %v1759 = vunpack.c.l.b16 %v1572
        %v1760 = vunpack.c.l.b16 %v1573
        %v1761 = vunpack.c.l.b16 %v1574
        %v1762 = vunpack.c.l.b16 %v1575
        %v1763 = vunpack.c.l.b16 %v1576
        %v1764 = vunpack.c.l.b16 %v1577
        %v1765 = vunpack.c.l.b16 %v1578
        %v1766 = vpack.c.b16 %v1687, %v1686
        %v1767 = vpack.c.b16 %v1689, %v1688
        %v1768 = vpack.c.b16 %v1691, %v1690
        %v1769 = vpack.c.b16 %v1693, %v1692
        %v1770 = vpack.c.b16 %v1695, %v1694
        %v1771 = vpack.c.b16 %v1697, %v1696
        %v1772 = vpack.c.b16 %v1699, %v1698
        %v1773 = vpack.c.b16 %v1701, %v1700
        %v1774 = vpack.c.b16 %v1703, %v1702
        %v1775 = vpack.c.b16 %v1705, %v1704
        %v1776 = vpack.c.b16 %v1707, %v1706
        %v1777 = vpack.c.b16 %v1709, %v1708
        %v1778 = vpack.c.b16 %v1711, %v1710
        %v1779 = vpack.c.b16 %v1713, %v1712
        %v1780 = vpack.c.b16 %v1715, %v1714
        %v1781 = vpack.c.b16 %v1717, %v1716
        %v1782 = vpack.c.b16 %v1719, %v1718
        %v1783 = vpack.c.b16 %v1721, %v1720
        %v1784 = vpack.c.b16 %v1723, %v1722
        %v1785 = vpack.c.b16 %v1725, %v1724
        %v1786 = vpack.c.b16 %v1727, %v1726
        %v1787 = vpack.c.b16 %v1729, %v1728
        %v1788 = vpack.c.b16 %v1731, %v1730
        %v1789 = vpack.c.b16 %v1733, %v1732
        %v1790 = vpack.c.b16 %v1735, %v1734
        %v1791 = vpack.c.b16 %v1737, %v1736
        %v1792 = vpack.c.b16 %v1739, %v1738
        %v1793 = vpack.c.b16 %v1741, %v1740
        %v1794 = vpack.c.b16 %v1743, %v1742
        %v1795 = vpack.c.b16 %v1745, %v1744
        %v1796 = vpack.c.b16 %v1747, %v1746
        %v1797 = vpack.c.b16 %v1749, %v1748
        %v1798 = vpack.c.b16 %v1751, %v1750
        %v1799 = vpack.c.b16 %v1753, %v1752
        %v1800 = vpack.c.b16 %v1755, %v1754
        %v1801 = vpack.c.b16 %v1757, %v1756
        %v1802 = vpack.c.b16 %v1759, %v1758
        %v1803 = vpack.c.b16 %v1761, %v1760
        %v1804 = vpack.c.b16 %v1763, %v1762
        %v1805 = vpack.c.b16 %v1765, %v1764
        %1846 = vmatprep.subr.bf16.mxu0 0
        %1847 = vmatpush1.bf16.msra.mxu0 %v1773
        %1848 = vmatprep.subr.bf16.mxu0 0
        %1849 = vmatpush1.bf16.msra.mxu0 %v1772
        %1850 = vmatprep.subr.bf16.mxu0 0
        %1851 = vmatpush1.bf16.msra.mxu0 %v1771
        %1852 = vmatprep.subr.bf16.mxu0 0
        %1853 = vmatpush1.bf16.msra.mxu0 %v1770
        %1854 = vmatprep.subr.bf16.mxu0 0
        %1855 = vmatpush1.bf16.msra.mxu0 %v1769
        %1856 = vmatprep.subr.bf16.mxu0 0
        %1857 = vmatpush1.bf16.msra.mxu0 %v1768
        %1858 = vmatprep.subr.bf16.mxu0 0
        %1859 = vmatpush1.bf16.msra.mxu0 %v1767
        %1860 = vmatprep.subr.bf16.mxu0 0
        %1861 = vmatpush1.bf16.msra.mxu0 %v1766
        %1862 = vmatprep.subr.bf16.mxu0 0
        %1863 = vmatpush2.bf16.msra.mxu0 %v1781
        %1864 = vmatprep.subr.bf16.mxu0 0
        %1865 = vmatpush2.bf16.msra.mxu0 %v1780
        %1866 = vmatprep.subr.bf16.mxu0 0
        %1867 = vmatpush2.bf16.msra.mxu0 %v1779
        %1868 = vmatprep.subr.bf16.mxu0 0
        %1869 = vmatpush2.bf16.msra.mxu0 %v1778
        %1870 = vmatprep.subr.bf16.mxu0 0
        %1871 = vmatpush2.bf16.msra.mxu0 %v1777
        %1872 = vmatprep.subr.bf16.mxu0 0
        %1873 = vmatpush2.bf16.msra.mxu0 %v1776
        %1874 = vmatprep.subr.bf16.mxu0 0
        %1875 = vmatpush2.bf16.msra.mxu0 %v1775
        %1876 = vmatprep.subr.bf16.mxu0 0
        %1877 = vmatpush2.bf16.msra.mxu0 %v1774
        %1878 = vmatprep.mubr.bf16.mxu0 %v1592
        %1879 = vmatmul.mubr.bf16.gmra.mxu0 %v1589
        %v1880 = vpop.f32.mrf.mxu0
        %v1881 = vadd.f32 %v1585, %v1880
        %v1882 = vpop.f32.mrf.mxu0
        %v1883 = vpop.f32.mrf.mxu0
        %v1884 = vadd.f32 %v1585, %v1883
        %v1885 = vpop.f32.mrf.mxu0
        %1886 = vdwg.mxu0
        %1887 = vmatprep.subr.bf16.mxu0 0
        %1888 = vmatpush1.bf16.msra.mxu0 %v1789
        %1889 = vmatprep.subr.bf16.mxu0 0
        %1890 = vmatpush1.bf16.msra.mxu0 %v1788
        %1891 = vmatprep.subr.bf16.mxu0 0
        %1892 = vmatpush1.bf16.msra.mxu0 %v1787
        %1893 = vmatprep.subr.bf16.mxu0 0
        %1894 = vmatpush1.bf16.msra.mxu0 %v1786
        %1895 = vmatprep.subr.bf16.mxu0 0
        %1896 = vmatpush1.bf16.msra.mxu0 %v1785
        %1897 = vmatprep.subr.bf16.mxu0 0
        %1898 = vmatpush1.bf16.msra.mxu0 %v1784
        %1899 = vmatprep.subr.bf16.mxu0 0
        %1900 = vmatpush1.bf16.msra.mxu0 %v1783
        %1901 = vmatprep.subr.bf16.mxu0 0
        %1902 = vmatpush1.bf16.msra.mxu0 %v1782
        %1903 = vmatprep.subr.bf16.mxu0 0
        %1904 = vmatpush2.bf16.msra.mxu0 %v1797
        %1905 = vmatprep.subr.bf16.mxu0 0
        %1906 = vmatpush2.bf16.msra.mxu0 %v1796
        %1907 = vmatprep.subr.bf16.mxu0 0
        %1908 = vmatpush2.bf16.msra.mxu0 %v1795
        %1909 = vmatprep.subr.bf16.mxu0 0
        %1910 = vmatpush2.bf16.msra.mxu0 %v1794
        %1911 = vmatprep.subr.bf16.mxu0 0
        %1912 = vmatpush2.bf16.msra.mxu0 %v1793
        %1913 = vmatprep.subr.bf16.mxu0 0
        %1914 = vmatpush2.bf16.msra.mxu0 %v1792
        %1915 = vmatprep.subr.bf16.mxu0 0
        %1916 = vmatpush2.bf16.msra.mxu0 %v1791
        %1917 = vmatprep.subr.bf16.mxu0 0
        %1918 = vmatpush2.bf16.msra.mxu0 %v1790
        %1919 = vmatprep.mubr.bf16.mxu0 %v1598
        %1920 = vmatmul.mubr.bf16.gmra.mxu0 %v1595
        %v1921 = vpop.f32.mrf.mxu0
        %v1922 = vadd.f32 %v1881, %v1921
        %v1923 = vpop.f32.mrf.mxu0
        %v1924 = vpop.f32.mrf.mxu0
        %v1925 = vadd.f32 %v1884, %v1924
        %v1926 = vpop.f32.mrf.mxu0
        %1927 = vdwg.mxu0
        %1928 = vmatprep.subr.bf16.mxu0 0
        %1929 = vmatpush1.bf16.msra.mxu0 %v1805
        %1930 = vmatprep.subr.bf16.mxu0 0
        %1931 = vmatpush1.bf16.msra.mxu0 %v1804
        %1932 = vmatprep.subr.bf16.mxu0 0
        %1933 = vmatpush1.bf16.msra.mxu0 %v1803
        %1934 = vmatprep.subr.bf16.mxu0 0
        %1935 = vmatpush1.bf16.msra.mxu0 %v1802
        %1936 = vmatprep.subr.bf16.mxu0 0
        %1937 = vmatpush1.bf16.msra.mxu0 %v1801
        %1938 = vmatprep.subr.bf16.mxu0 0
        %1939 = vmatpush1.bf16.msra.mxu0 %v1800
        %1940 = vmatprep.subr.bf16.mxu0 0
        %1941 = vmatpush1.bf16.msra.mxu0 %v1799
        %1942 = vmatprep.subr.bf16.mxu0 0
        %1943 = vmatpush1.bf16.msra.mxu0 %v1798
        %1944 = vmatprep.subr.bf16.mxu0 0
        %1945 = vmatpush2.bf16.msra.mxu0 0
        %1946 = vmatprep.subr.bf16.mxu0 0
        %1947 = vmatpush2.bf16.msra.mxu0 0
        %1948 = vmatprep.subr.bf16.mxu0 0
        %1949 = vmatpush2.bf16.msra.mxu0 0
        %1950 = vmatprep.subr.bf16.mxu0 0
        %1951 = vmatpush2.bf16.msra.mxu0 0
        %1952 = vmatprep.subr.bf16.mxu0 0
        %1953 = vmatpush2.bf16.msra.mxu0 0
        %1954 = vmatprep.subr.bf16.mxu0 0
        %1955 = vmatpush2.bf16.msra.mxu0 0
        %1956 = vmatprep.subr.bf16.mxu0 0
        %1957 = vmatpush2.bf16.msra.mxu0 0
        %1958 = vmatprep.subr.bf16.mxu0 0
        %1959 = vmatpush2.bf16.msra.mxu0 0
        %1960 = vmatprep.mubr.bf16.mxu0 0
        %1961 = vmatmul.mubr.bf16.gmra.mxu0 %v1600
        %v1962 = vpop.f32.mrf.mxu0
        %v1963 = vadd.f32 %v1922, %v1962
        %v1964 = vpop.f32.mrf.mxu0
        %v1965 = vpop.f32.mrf.mxu0
        %v1966 = vadd.f32 %v1925, %v1965
        %v1967 = vpop.f32.mrf.mxu0
        %1968 = vdwg.mxu0
        %v1969 = vtanh.pop %v1963
        %v1970 = vtanh.pop %v1966
        %s1971 = sadd.s32 %s213, 4294967292
        %v1972 = vstv %s1971
        %v1973 = vadd.s32 %v1972, %v769
        %v1974 = vadd.s32 %v1972, %v770
        %vm1975 = vcmp.ge.s32.totalorder %v1973, 0
        %vm1976 = vcmp.ge.s32.totalorder %v1974, 0
        %vm1977 = vcmp.lt.s32.totalorder %v1973, 8
        %vm1978 = vcmp.lt.s32.totalorder %v1974, 8
        %vm1979 = vmand %vm1975, %vm1977
        %vm1980 = vmand %vm1976, %vm1978
        %v1981 = vsel %vm1979, 1, 0
        %v1982 = vsel %vm1980, 1, 0
        %v1983 = vcvt.s32.f32 %v1981
        %v1984 = vcvt.s32.f32 %v1982
        %v1985 = vmul.f32 %v1969, %v1983
        %v1986 = vmul.f32 %v1970, %v1984
        %v1987 = vpack.c.bf16 %v1986, %v1985
        %v1989 = vunpack.c.l.b16 %v1987
        %v1990 = vunpack.c.h.b16 %v1987
        %v1991 = vpack.c.b16 %v1989, %v1989
        %v1992 = vpack.c.b16 %v1990, %v1990
        %vm1993 = vcmask 1042432
        %vm1994 = vcmask 1046532
        %vm1995 = vmor %vm1993, %vm1994
        %v1996 = vrot.slane %v1991, 5
        %v1997 = vrot.slane %v1996, 4
        %v1998 = vrot.slane %v1992, 5
        %v1999 = vsel %vm1995, %v1997, %v1998
        %v2000 = vrot.slane %v1998, 4
        %2004 = vst [vmem:[#allocation2] sm:$0x8] %v1996
        %2005 = vst [vmem:[#allocation2 + $0x4] sm:$0xf] %v1999
        %2006 = vst [vmem:[#allocation2 + $0x8] sm:$0x7] %v2000
        %v2007 = vld [vmem:[#allocation2] sm:$0x8]
        %v2008 = vld [vmem:[#allocation2 + $0x4] sm:$0xf]
        %v2009 = vld [vmem:[#allocation2 + $0x8] sm:$0x1]
        %v2010 = vld [vmem:[#allocation2 + $0x8] sm:$0x3]
        %v2011 = vld [vmem:[#allocation2 + $0x8] sm:$0x7]
        %v2012 = vld [vmem:[#allocation2 + $0x4] sm:$0xe]
        %v2016 = vunpack.c.l.b16 %v2007
        %v2017 = vunpack.c.l.b16 %v2008
        %v2018 = vunpack.c.l.b16 %v2009
        %v2019 = vpack.c.b16 %v2017, %v2016
        %v2020 = vpack.c.b16 %v2018, %v2018
        %v2022 = vunpack.c.l.b16 %v2010
        %v2023 = vpack.c.b16 %v2022, %v2022
        %v2025 = vshrl.u32 %v2019, 16
        %v2027 = vshll.u32 %v2019, 16
        %v2029 = vrot.slane %v2027, 1
        %v2030 = vor.u32 %v2025, %v2029
        %v2032 = vshll.u32 %v2023, 16
        %v2034 = vrot.slane %v2032, 1
        %v2035 = vsel %vm234, %v2030, %v2034
        %v2036 = vshrl.u32 %v2023, 16
        %v2038 = vor.u32 %v2036, %v2034
        %v2039 = vpack.c.b16 %v2022, %v2017
        %v2040 = vrot.slane %v2039, 5
        %v2042 = vunpack.c.l.b16 %v2011
        %v2043 = vpack.c.b16 %v2042, %v2017
        %v2045 = vshrl.u32 %v2043, 16
        %v2047 = vrot.slane %v2045, 5
        %v2048 = vshll.u32 %v2043, 16
        %v2050 = vrot.slane %v2048, 6
        %v2051 = vor.u32 %v2047, %v2050
        %v2053 = vunpack.c.l.b16 %v2012
        %v2054 = vpack.c.b16 %v2042, %v2053
        %v2055 = vrot.slane %v2054, 6
        %s2056 = scalar_lea.vmem [#allocation4], 960
        %v2057 = vld [vmem:[%s2056] sm:$0xf]
        %v2058 = vld [vmem:[%s2056 + $0x4] sm:$0xf]
        %v2059 = vld [vmem:[%s2056 + $0x8] sm:$0xf]
        %v2060 = vld [vmem:[%s2056 + $0xc] sm:$0xf]
        %v2061 = vld [vmem:[%s2056 + $0x10] sm:$0xf]
        %v2062 = vld [vmem:[%s2056 + $0x14] sm:$0xf]
        %v2063 = vld [vmem:[%s2056 + $0x18] sm:$0xf]
        %v2064 = vld [vmem:[%s2056 + $0x1c] sm:$0xf]
        %v2065 = vld [vmem:[%s2056 + $0x20] sm:$0xf]
        %v2066 = vld [vmem:[%s2056 + $0x24] sm:$0xf]
        %v2067 = vld [vmem:[%s2056 + $0x28] sm:$0xf]
        %v2068 = vld [vmem:[%s2056 + $0x2c] sm:$0xf]
        %v2069 = vld [vmem:[%s2056 + $0x30] sm:$0xf]
        %v2070 = vld [vmem:[%s2056 + $0x34] sm:$0xf]
        %v2071 = vld [vmem:[%s2056 + $0x38] sm:$0xf]
        %v2072 = vld [vmem:[%s2056 + $0x3c] sm:$0xf]
        %v2073 = vld [vmem:[%s2056 + $0x40] sm:$0xf]
        %v2074 = vld [vmem:[%s2056 + $0x44] sm:$0xf]
        %v2075 = vld [vmem:[%s2056 + $0x48] sm:$0xf]
        %v2076 = vld [vmem:[%s2056 + $0x4c] sm:$0xf]
        %v2077 = vld [vmem:[%s2056 + $0x50] sm:$0xf]
        %v2078 = vld [vmem:[%s2056 + $0x54] sm:$0xf]
        %v2079 = vld [vmem:[%s2056 + $0x58] sm:$0xf]
        %v2080 = vld [vmem:[%s2056 + $0x5c] sm:$0xf]
        %v2081 = vld [vmem:[%s2056 + $0x60] sm:$0xf]
        %v2082 = vld [vmem:[%s2056 + $0x64] sm:$0xf]
        %v2083 = vld [vmem:[%s2056 + $0x68] sm:$0xf]
        %v2084 = vld [vmem:[%s2056 + $0x6c] sm:$0xf]
        %v2085 = vld [vmem:[%s2056 + $0x70] sm:$0xf]
        %v2086 = vld [vmem:[%s2056 + $0x74] sm:$0xf]
        %v2087 = vld [vmem:[%s2056 + $0x78] sm:$0xf]
        %v2088 = vld [vmem:[%s2056 + $0x7c] sm:$0xf]
        %v2089 = vld [vmem:[%s2056 + $0x80] sm:$0xf]
        %v2090 = vld [vmem:[%s2056 + $0x84] sm:$0xf]
        %v2091 = vld [vmem:[%s2056 + $0x88] sm:$0xf]
        %v2092 = vld [vmem:[%s2056 + $0x8c] sm:$0xf]
        %v2093 = vld [vmem:[%s2056 + $0x90] sm:$0xf]
        %v2094 = vld [vmem:[%s2056 + $0x94] sm:$0xf]
        %v2095 = vld [vmem:[%s2056 + $0x98] sm:$0xf]
        %v2096 = vld [vmem:[%s2056 + $0x9c] sm:$0xf]
        %v2097 = vld [vmem:[%s2056 + $0xa0] sm:$0xf]
        %v2098 = vld [vmem:[%s2056 + $0xa4] sm:$0xf]
        %v2099 = vld [vmem:[%s2056 + $0xa8] sm:$0xf]
        %v2100 = vld [vmem:[%s2056 + $0xac] sm:$0xf]
        %v2101 = vld [vmem:[%s2056 + $0xb0] sm:$0xf]
        %v2102 = vld [vmem:[%s2056 + $0xb4] sm:$0xf]
        %v2103 = vld [vmem:[%s2056 + $0xb8] sm:$0xf]
        %v2104 = vld [vmem:[%s2056 + $0xbc] sm:$0xf]
        %v2105 = vld [vmem:[%s2056 + $0xc0] sm:$0xf]
        %v2106 = vld [vmem:[%s2056 + $0xc4] sm:$0xf]
        %v2107 = vld [vmem:[%s2056 + $0xc8] sm:$0xf]
        %v2108 = vld [vmem:[%s2056 + $0xcc] sm:$0xf]
        %v2109 = vld [vmem:[%s2056 + $0xd0] sm:$0xf]
        %v2110 = vld [vmem:[%s2056 + $0xd4] sm:$0xf]
        %v2111 = vld [vmem:[%s2056 + $0xd8] sm:$0xf]
        %v2112 = vld [vmem:[%s2056 + $0xdc] sm:$0xf]
        %v2113 = vld [vmem:[%s2056 + $0xe0] sm:$0xf]
        %v2114 = vld [vmem:[%s2056 + $0xe4] sm:$0xf]
        %v2115 = vld [vmem:[%s2056 + $0xe8] sm:$0xf]
        %v2116 = vld [vmem:[%s2056 + $0xec] sm:$0xf]
        %v2117 = vld [vmem:[%s2056 + $0xf0] sm:$0xf]
        %v2118 = vld [vmem:[%s2056 + $0xf4] sm:$0xf]
        %v2119 = vld [vmem:[%s2056 + $0xf8] sm:$0xf]
        %v2120 = vld [vmem:[%s2056 + $0xfc] sm:$0xf]
        %v2121 = vld [vmem:[%s2056 + $0x100] sm:$0xf]
        %v2122 = vld [vmem:[%s2056 + $0x104] sm:$0xf]
        %v2123 = vld [vmem:[%s2056 + $0x108] sm:$0xf]
        %v2124 = vld [vmem:[%s2056 + $0x10c] sm:$0xf]
        %v2125 = vld [vmem:[%s2056 + $0x110] sm:$0xf]
        %v2126 = vld [vmem:[%s2056 + $0x114] sm:$0xf]
        %v2127 = vld [vmem:[%s2056 + $0x118] sm:$0xf]
        %v2128 = vld [vmem:[%s2056 + $0x11c] sm:$0xf]
        %v2129 = vld [vmem:[%s2056 + $0x120] sm:$0xf]
        %v2130 = vld [vmem:[%s2056 + $0x124] sm:$0xf]
        %v2131 = vld [vmem:[%s2056 + $0x128] sm:$0xf]
        %v2132 = vld [vmem:[%s2056 + $0x12c] sm:$0xf]
        %v2133 = vld [vmem:[%s2056 + $0x130] sm:$0xf]
        %v2134 = vld [vmem:[%s2056 + $0x134] sm:$0xf]
        %v2135 = vld [vmem:[%s2056 + $0x138] sm:$0xf]
        %v2136 = vld [vmem:[%s2056 + $0x13c] sm:$0xf]
        %s2137 = scalar_lea.vmem %s2, 3
        %v2138 = vld [vmem:[%s2137] sm:$0x1]
        %v2140 = vlaneseq
        %v2141 = vshrl.u32 %v2140, 7
        %v2142 = vsub.s32 0, %v2141
        %v2143 = vrot.slane %v2138, %v2142
        %vm2145 = vcmask 1044480
        %v2146 = vrot.slane %v2019, 3
        %v2147 = vrot.slane %v2020, 3
        %v2148 = vsel %vm2145, %v2146, %v2147
        %v2149 = vrot.slane %v2035, 3
        %v2150 = vrot.slane %v2038, 3
        %v2151 = vsel %vm2145, %v2149, %v2150
        %v2152 = vrot.slane %v2040, 3
        %v2153 = vsel %vm2145, %v2152, %v2152
        %v2154 = vrot.slane %v2051, 3
        %v2155 = vsel %vm2145, %v2154, %v2154
        %v2156 = vrot.slane %v2055, 3
        %v2157 = vsel %vm2145, %v2156, %v2156
        %v2243 = vunpack.c.l.b16 %v2057
        %v2244 = vunpack.c.l.b16 %v2058
        %v2245 = vunpack.c.l.b16 %v2059
        %v2246 = vunpack.c.l.b16 %v2060
        %v2247 = vunpack.c.l.b16 %v2061
        %v2248 = vunpack.c.l.b16 %v2062
        %v2249 = vunpack.c.l.b16 %v2063
        %v2250 = vunpack.c.l.b16 %v2064
        %v2251 = vunpack.c.l.b16 %v2065
        %v2252 = vunpack.c.l.b16 %v2066
        %v2253 = vunpack.c.l.b16 %v2067
        %v2254 = vunpack.c.l.b16 %v2068
        %v2255 = vunpack.c.l.b16 %v2069
        %v2256 = vunpack.c.l.b16 %v2070
        %v2257 = vunpack.c.l.b16 %v2071
        %v2258 = vunpack.c.l.b16 %v2072
        %v2259 = vunpack.c.l.b16 %v2073
        %v2260 = vunpack.c.l.b16 %v2074
        %v2261 = vunpack.c.l.b16 %v2075
        %v2262 = vunpack.c.l.b16 %v2076
        %v2263 = vunpack.c.l.b16 %v2077
        %v2264 = vunpack.c.l.b16 %v2078
        %v2265 = vunpack.c.l.b16 %v2079
        %v2266 = vunpack.c.l.b16 %v2080
        %v2267 = vunpack.c.l.b16 %v2081
        %v2268 = vunpack.c.l.b16 %v2082
        %v2269 = vunpack.c.l.b16 %v2083
        %v2270 = vunpack.c.l.b16 %v2084
        %v2271 = vunpack.c.l.b16 %v2085
        %v2272 = vunpack.c.l.b16 %v2086
        %v2273 = vunpack.c.l.b16 %v2087
        %v2274 = vunpack.c.l.b16 %v2088
        %v2275 = vunpack.c.l.b16 %v2089
        %v2276 = vunpack.c.l.b16 %v2090
        %v2277 = vunpack.c.l.b16 %v2091
        %v2278 = vunpack.c.l.b16 %v2092
        %v2279 = vunpack.c.l.b16 %v2093
        %v2280 = vunpack.c.l.b16 %v2094
        %v2281 = vunpack.c.l.b16 %v2095
        %v2282 = vunpack.c.l.b16 %v2096
        %v2283 = vunpack.c.l.b16 %v2097
        %v2284 = vunpack.c.l.b16 %v2098
        %v2285 = vunpack.c.l.b16 %v2099
        %v2286 = vunpack.c.l.b16 %v2100
        %v2287 = vunpack.c.l.b16 %v2101
        %v2288 = vunpack.c.l.b16 %v2102
        %v2289 = vunpack.c.l.b16 %v2103
        %v2290 = vunpack.c.l.b16 %v2104
        %v2291 = vunpack.c.l.b16 %v2105
        %v2292 = vunpack.c.l.b16 %v2106
        %v2293 = vunpack.c.l.b16 %v2107
        %v2294 = vunpack.c.l.b16 %v2108
        %v2295 = vunpack.c.l.b16 %v2109
        %v2296 = vunpack.c.l.b16 %v2110
        %v2297 = vunpack.c.l.b16 %v2111
        %v2298 = vunpack.c.l.b16 %v2112
        %v2299 = vunpack.c.l.b16 %v2113
        %v2300 = vunpack.c.l.b16 %v2114
        %v2301 = vunpack.c.l.b16 %v2115
        %v2302 = vunpack.c.l.b16 %v2116
        %v2303 = vunpack.c.l.b16 %v2117
        %v2304 = vunpack.c.l.b16 %v2118
        %v2305 = vunpack.c.l.b16 %v2119
        %v2306 = vunpack.c.l.b16 %v2120
        %v2307 = vunpack.c.l.b16 %v2121
        %v2308 = vunpack.c.l.b16 %v2122
        %v2309 = vunpack.c.l.b16 %v2123
        %v2310 = vunpack.c.l.b16 %v2124
        %v2311 = vunpack.c.l.b16 %v2125
        %v2312 = vunpack.c.l.b16 %v2126
        %v2313 = vunpack.c.l.b16 %v2127
        %v2314 = vunpack.c.l.b16 %v2128
        %v2315 = vunpack.c.l.b16 %v2129
        %v2316 = vunpack.c.l.b16 %v2130
        %v2317 = vunpack.c.l.b16 %v2131
        %v2318 = vunpack.c.l.b16 %v2132
        %v2319 = vunpack.c.l.b16 %v2133
        %v2320 = vunpack.c.l.b16 %v2134
        %v2321 = vunpack.c.l.b16 %v2135
        %v2322 = vunpack.c.l.b16 %v2136
        %v2323 = vpack.c.b16 %v2244, %v2243
        %v2324 = vpack.c.b16 %v2246, %v2245
        %v2325 = vpack.c.b16 %v2248, %v2247
        %v2326 = vpack.c.b16 %v2250, %v2249
        %v2327 = vpack.c.b16 %v2252, %v2251
        %v2328 = vpack.c.b16 %v2254, %v2253
        %v2329 = vpack.c.b16 %v2256, %v2255
        %v2330 = vpack.c.b16 %v2258, %v2257
        %v2331 = vpack.c.b16 %v2260, %v2259
        %v2332 = vpack.c.b16 %v2262, %v2261
        %v2333 = vpack.c.b16 %v2264, %v2263
        %v2334 = vpack.c.b16 %v2266, %v2265
        %v2335 = vpack.c.b16 %v2268, %v2267
        %v2336 = vpack.c.b16 %v2270, %v2269
        %v2337 = vpack.c.b16 %v2272, %v2271
        %v2338 = vpack.c.b16 %v2274, %v2273
        %v2339 = vpack.c.b16 %v2276, %v2275
        %v2340 = vpack.c.b16 %v2278, %v2277
        %v2341 = vpack.c.b16 %v2280, %v2279
        %v2342 = vpack.c.b16 %v2282, %v2281
        %v2343 = vpack.c.b16 %v2284, %v2283
        %v2344 = vpack.c.b16 %v2286, %v2285
        %v2345 = vpack.c.b16 %v2288, %v2287
        %v2346 = vpack.c.b16 %v2290, %v2289
        %v2347 = vpack.c.b16 %v2292, %v2291
        %v2348 = vpack.c.b16 %v2294, %v2293
        %v2349 = vpack.c.b16 %v2296, %v2295
        %v2350 = vpack.c.b16 %v2298, %v2297
        %v2351 = vpack.c.b16 %v2300, %v2299
        %v2352 = vpack.c.b16 %v2302, %v2301
        %v2353 = vpack.c.b16 %v2304, %v2303
        %v2354 = vpack.c.b16 %v2306, %v2305
        %v2355 = vpack.c.b16 %v2308, %v2307
        %v2356 = vpack.c.b16 %v2310, %v2309
        %v2357 = vpack.c.b16 %v2312, %v2311
        %v2358 = vpack.c.b16 %v2314, %v2313
        %v2359 = vpack.c.b16 %v2316, %v2315
        %v2360 = vpack.c.b16 %v2318, %v2317
        %v2361 = vpack.c.b16 %v2320, %v2319
        %v2362 = vpack.c.b16 %v2322, %v2321
        %2403 = vmatprep.subr.bf16.mxu0 0
        %2404 = vmatpush1.bf16.msra.mxu0 %v2330
        %2405 = vmatprep.subr.bf16.mxu0 0
        %2406 = vmatpush1.bf16.msra.mxu0 %v2329
        %2407 = vmatprep.subr.bf16.mxu0 0
        %2408 = vmatpush1.bf16.msra.mxu0 %v2328
        %2409 = vmatprep.subr.bf16.mxu0 0
        %2410 = vmatpush1.bf16.msra.mxu0 %v2327
        %2411 = vmatprep.subr.bf16.mxu0 0
        %2412 = vmatpush1.bf16.msra.mxu0 %v2326
        %2413 = vmatprep.subr.bf16.mxu0 0
        %2414 = vmatpush1.bf16.msra.mxu0 %v2325
        %2415 = vmatprep.subr.bf16.mxu0 0
        %2416 = vmatpush1.bf16.msra.mxu0 %v2324
        %2417 = vmatprep.subr.bf16.mxu0 0
        %2418 = vmatpush1.bf16.msra.mxu0 %v2323
        %2419 = vmatprep.subr.bf16.mxu0 0
        %2420 = vmatpush2.bf16.msra.mxu0 %v2338
        %2421 = vmatprep.subr.bf16.mxu0 0
        %2422 = vmatpush2.bf16.msra.mxu0 %v2337
        %2423 = vmatprep.subr.bf16.mxu0 0
        %2424 = vmatpush2.bf16.msra.mxu0 %v2336
        %2425 = vmatprep.subr.bf16.mxu0 0
        %2426 = vmatpush2.bf16.msra.mxu0 %v2335
        %2427 = vmatprep.subr.bf16.mxu0 0
        %2428 = vmatpush2.bf16.msra.mxu0 %v2334
        %2429 = vmatprep.subr.bf16.mxu0 0
        %2430 = vmatpush2.bf16.msra.mxu0 %v2333
        %2431 = vmatprep.subr.bf16.mxu0 0
        %2432 = vmatpush2.bf16.msra.mxu0 %v2332
        %2433 = vmatprep.subr.bf16.mxu0 0
        %2434 = vmatpush2.bf16.msra.mxu0 %v2331
        %2435 = vmatprep.mubr.bf16.mxu0 %v2151
        %2436 = vmatmul.mubr.bf16.gmra.mxu0 %v2148
        %v2437 = vpop.f32.mrf.mxu0
        %v2438 = vadd.f32 %v2143, %v2437
        %v2439 = vpop.f32.mrf.mxu0
        %v2440 = vpop.f32.mrf.mxu0
        %v2441 = vadd.f32 %v2143, %v2440
        %v2442 = vpop.f32.mrf.mxu0
        %2443 = vdwg.mxu0
        %2444 = vmatprep.subr.bf16.mxu0 0
        %2445 = vmatpush1.bf16.msra.mxu0 %v2346
        %2446 = vmatprep.subr.bf16.mxu0 0
        %2447 = vmatpush1.bf16.msra.mxu0 %v2345
        %2448 = vmatprep.subr.bf16.mxu0 0
        %2449 = vmatpush1.bf16.msra.mxu0 %v2344
        %2450 = vmatprep.subr.bf16.mxu0 0
        %2451 = vmatpush1.bf16.msra.mxu0 %v2343
        %2452 = vmatprep.subr.bf16.mxu0 0
        %2453 = vmatpush1.bf16.msra.mxu0 %v2342
        %2454 = vmatprep.subr.bf16.mxu0 0
        %2455 = vmatpush1.bf16.msra.mxu0 %v2341
        %2456 = vmatprep.subr.bf16.mxu0 0
        %2457 = vmatpush1.bf16.msra.mxu0 %v2340
        %2458 = vmatprep.subr.bf16.mxu0 0
        %2459 = vmatpush1.bf16.msra.mxu0 %v2339
        %2460 = vmatprep.subr.bf16.mxu0 0
        %2461 = vmatpush2.bf16.msra.mxu0 %v2354
        %2462 = vmatprep.subr.bf16.mxu0 0
        %2463 = vmatpush2.bf16.msra.mxu0 %v2353
        %2464 = vmatprep.subr.bf16.mxu0 0
        %2465 = vmatpush2.bf16.msra.mxu0 %v2352
        %2466 = vmatprep.subr.bf16.mxu0 0
        %2467 = vmatpush2.bf16.msra.mxu0 %v2351
        %2468 = vmatprep.subr.bf16.mxu0 0
        %2469 = vmatpush2.bf16.msra.mxu0 %v2350
        %2470 = vmatprep.subr.bf16.mxu0 0
        %2471 = vmatpush2.bf16.msra.mxu0 %v2349
        %2472 = vmatprep.subr.bf16.mxu0 0
        %2473 = vmatpush2.bf16.msra.mxu0 %v2348
        %2474 = vmatprep.subr.bf16.mxu0 0
        %2475 = vmatpush2.bf16.msra.mxu0 %v2347
        %2476 = vmatprep.mubr.bf16.mxu0 %v2155
        %2477 = vmatmul.mubr.bf16.gmra.mxu0 %v2153
        %v2478 = vpop.f32.mrf.mxu0
        %v2479 = vadd.f32 %v2438, %v2478
        %v2480 = vpop.f32.mrf.mxu0
        %v2481 = vpop.f32.mrf.mxu0
        %v2482 = vadd.f32 %v2441, %v2481
        %v2483 = vpop.f32.mrf.mxu0
        %2484 = vdwg.mxu0
        %2485 = vmatprep.subr.bf16.mxu0 0
        %2486 = vmatpush1.bf16.msra.mxu0 %v2362
        %2487 = vmatprep.subr.bf16.mxu0 0
        %2488 = vmatpush1.bf16.msra.mxu0 %v2361
        %2489 = vmatprep.subr.bf16.mxu0 0
        %2490 = vmatpush1.bf16.msra.mxu0 %v2360
        %2491 = vmatprep.subr.bf16.mxu0 0
        %2492 = vmatpush1.bf16.msra.mxu0 %v2359
        %2493 = vmatprep.subr.bf16.mxu0 0
        %2494 = vmatpush1.bf16.msra.mxu0 %v2358
        %2495 = vmatprep.subr.bf16.mxu0 0
        %2496 = vmatpush1.bf16.msra.mxu0 %v2357
        %2497 = vmatprep.subr.bf16.mxu0 0
        %2498 = vmatpush1.bf16.msra.mxu0 %v2356
        %2499 = vmatprep.subr.bf16.mxu0 0
        %2500 = vmatpush1.bf16.msra.mxu0 %v2355
        %2501 = vmatprep.subr.bf16.mxu0 0
        %2502 = vmatpush2.bf16.msra.mxu0 0
        %2503 = vmatprep.subr.bf16.mxu0 0
        %2504 = vmatpush2.bf16.msra.mxu0 0
        %2505 = vmatprep.subr.bf16.mxu0 0
        %2506 = vmatpush2.bf16.msra.mxu0 0
        %2507 = vmatprep.subr.bf16.mxu0 0
        %2508 = vmatpush2.bf16.msra.mxu0 0
        %2509 = vmatprep.subr.bf16.mxu0 0
        %2510 = vmatpush2.bf16.msra.mxu0 0
        %2511 = vmatprep.subr.bf16.mxu0 0
        %2512 = vmatpush2.bf16.msra.mxu0 0
        %2513 = vmatprep.subr.bf16.mxu0 0
        %2514 = vmatpush2.bf16.msra.mxu0 0
        %2515 = vmatprep.subr.bf16.mxu0 0
        %2516 = vmatpush2.bf16.msra.mxu0 0
        %2517 = vmatprep.mubr.bf16.mxu0 0
        %2518 = vmatmul.mubr.bf16.gmra.mxu0 %v2157
        %v2519 = vpop.f32.mrf.mxu0
        %v2520 = vadd.f32 %v2479, %v2519
        %v2521 = vpop.f32.mrf.mxu0
        %v2522 = vpop.f32.mrf.mxu0
        %v2523 = vadd.f32 %v2482, %v2522
        %v2524 = vpop.f32.mrf.mxu0
        %2525 = vdwg.mxu0
        %v2526 = vtanh.pop %v2520
        %v2527 = vtanh.pop %v2523
        %s2528 = sadd.s32 %s213, 4294967294
        %v2529 = vstv %s2528
        %v2530 = vadd.s32 %v2529, %v769
        %v2531 = vadd.s32 %v2529, %v770
        %vm2532 = vcmp.ge.s32.totalorder %v2530, 0
        %vm2533 = vcmp.ge.s32.totalorder %v2531, 0
        %vm2534 = vcmp.lt.s32.totalorder %v2530, 8
        %vm2535 = vcmp.lt.s32.totalorder %v2531, 8
        %vm2536 = vmand %vm2532, %vm2534
        %vm2537 = vmand %vm2533, %vm2535
        %v2538 = vsel %vm2536, 1, 0
        %v2539 = vsel %vm2537, 1, 0
        %v2540 = vcvt.s32.f32 %v2538
        %v2541 = vcvt.s32.f32 %v2539
        %v2542 = vmul.f32 %v2526, %v2540
        %v2543 = vmul.f32 %v2527, %v2541
        %v2544 = vpack.c.bf16 %v2543, %v2542
        %v2546 = vunpack.c.l.b16 %v2544
        %v2547 = vunpack.c.h.b16 %v2544
        %v2548 = vpack.c.b16 %v2546, %v2546
        %v2549 = vpack.c.b16 %v2547, %v2547
        %2552 = vst [vmem:[#allocation3 + $0x4] sm:$0xf] %v2548
        %2553 = vst [vmem:[#allocation3 + $0x8] sm:$0x3] %v2549
        %v2554 = vld [vmem:[#allocation3 + $0x4] sm:$0xf]
        %v2555 = vld [vmem:[#allocation3 + $0x8] sm:$0x1]
        %v2556 = vld [vmem:[#allocation3 + $0x4] sm:$0xe]
        %v2557 = vld [vmem:[#allocation3 + $0x8] sm:$0x3]
        %v2558 = vld [vmem:[#allocation3 + $0x4] sm:$0xc]
        %v2561 = vunpack.c.l.b16 %v2554
        %v2562 = vunpack.c.l.b16 %v2555
        %v2563 = vpack.c.b16 %v2562, %v2561
        %v2565 = vshrl.u32 %v2563, 16
        %v2567 = vshll.u32 %v2563, 16
        %v2569 = vrot.slane %v2567, 1
        %v2570 = vor.u32 %v2565, %v2569
        %v2573 = vunpack.c.l.b16 %v2556
        %v2574 = vpack.c.b16 %v2562, %v2573
        %v2575 = vrot.slane %v2574, 1
        %v2578 = vunpack.c.l.b16 %v2557
        %v2579 = vpack.c.b16 %v2578, %v2573
        %v2581 = vshrl.u32 %v2579, 16
        %v2583 = vrot.slane %v2581, 1
        %v2584 = vshll.u32 %v2579, 16
        %v2586 = vrot.slane %v2584, 2
        %v2587 = vor.u32 %v2583, %v2586
        %v2590 = vunpack.c.l.b16 %v2558
        %v2591 = vpack.c.b16 %v2578, %v2590
        %v2592 = vrot.slane %v2591, 2
        %s2594 = scalar_lea.vmem [#allocation4], 1280
        %v2595 = vld [vmem:[%s2594] sm:$0xf]
        %v2596 = vld [vmem:[%s2594 + $0x4] sm:$0xf]
        %v2597 = vld [vmem:[%s2594 + $0x8] sm:$0xf]
        %v2598 = vld [vmem:[%s2594 + $0xc] sm:$0xf]
        %v2599 = vld [vmem:[%s2594 + $0x10] sm:$0xf]
        %v2600 = vld [vmem:[%s2594 + $0x14] sm:$0xf]
        %v2601 = vld [vmem:[%s2594 + $0x18] sm:$0xf]
        %v2602 = vld [vmem:[%s2594 + $0x1c] sm:$0xf]
        %v2603 = vld [vmem:[%s2594 + $0x20] sm:$0xf]
        %v2604 = vld [vmem:[%s2594 + $0x24] sm:$0xf]
        %v2605 = vld [vmem:[%s2594 + $0x28] sm:$0xf]
        %v2606 = vld [vmem:[%s2594 + $0x2c] sm:$0xf]
        %v2607 = vld [vmem:[%s2594 + $0x30] sm:$0xf]
        %v2608 = vld [vmem:[%s2594 + $0x34] sm:$0xf]
        %v2609 = vld [vmem:[%s2594 + $0x38] sm:$0xf]
        %v2610 = vld [vmem:[%s2594 + $0x3c] sm:$0xf]
        %v2611 = vld [vmem:[%s2594 + $0x40] sm:$0xf]
        %v2612 = vld [vmem:[%s2594 + $0x44] sm:$0xf]
        %v2613 = vld [vmem:[%s2594 + $0x48] sm:$0xf]
        %v2614 = vld [vmem:[%s2594 + $0x4c] sm:$0xf]
        %v2615 = vld [vmem:[%s2594 + $0x50] sm:$0xf]
        %v2616 = vld [vmem:[%s2594 + $0x54] sm:$0xf]
        %v2617 = vld [vmem:[%s2594 + $0x58] sm:$0xf]
        %v2618 = vld [vmem:[%s2594 + $0x5c] sm:$0xf]
        %v2619 = vld [vmem:[%s2594 + $0x60] sm:$0xf]
        %v2620 = vld [vmem:[%s2594 + $0x64] sm:$0xf]
        %v2621 = vld [vmem:[%s2594 + $0x68] sm:$0xf]
        %v2622 = vld [vmem:[%s2594 + $0x6c] sm:$0xf]
        %v2623 = vld [vmem:[%s2594 + $0x70] sm:$0xf]
        %v2624 = vld [vmem:[%s2594 + $0x74] sm:$0xf]
        %v2625 = vld [vmem:[%s2594 + $0x78] sm:$0xf]
        %v2626 = vld [vmem:[%s2594 + $0x7c] sm:$0xf]
        %v2627 = vld [vmem:[%s2594 + $0x80] sm:$0xf]
        %v2628 = vld [vmem:[%s2594 + $0x84] sm:$0xf]
        %v2629 = vld [vmem:[%s2594 + $0x88] sm:$0xf]
        %v2630 = vld [vmem:[%s2594 + $0x8c] sm:$0xf]
        %v2631 = vld [vmem:[%s2594 + $0x90] sm:$0xf]
        %v2632 = vld [vmem:[%s2594 + $0x94] sm:$0xf]
        %v2633 = vld [vmem:[%s2594 + $0x98] sm:$0xf]
        %v2634 = vld [vmem:[%s2594 + $0x9c] sm:$0xf]
        %v2635 = vld [vmem:[%s2594 + $0xa0] sm:$0xf]
        %v2636 = vld [vmem:[%s2594 + $0xa4] sm:$0xf]
        %v2637 = vld [vmem:[%s2594 + $0xa8] sm:$0xf]
        %v2638 = vld [vmem:[%s2594 + $0xac] sm:$0xf]
        %v2639 = vld [vmem:[%s2594 + $0xb0] sm:$0xf]
        %v2640 = vld [vmem:[%s2594 + $0xb4] sm:$0xf]
        %v2641 = vld [vmem:[%s2594 + $0xb8] sm:$0xf]
        %v2642 = vld [vmem:[%s2594 + $0xbc] sm:$0xf]
        %v2643 = vld [vmem:[%s2594 + $0xc0] sm:$0xf]
        %v2644 = vld [vmem:[%s2594 + $0xc4] sm:$0xf]
        %v2645 = vld [vmem:[%s2594 + $0xc8] sm:$0xf]
        %v2646 = vld [vmem:[%s2594 + $0xcc] sm:$0xf]
        %v2647 = vld [vmem:[%s2594 + $0xd0] sm:$0xf]
        %v2648 = vld [vmem:[%s2594 + $0xd4] sm:$0xf]
        %v2649 = vld [vmem:[%s2594 + $0xd8] sm:$0xf]
        %v2650 = vld [vmem:[%s2594 + $0xdc] sm:$0xf]
        %v2651 = vld [vmem:[%s2594 + $0xe0] sm:$0xf]
        %v2652 = vld [vmem:[%s2594 + $0xe4] sm:$0xf]
        %v2653 = vld [vmem:[%s2594 + $0xe8] sm:$0xf]
        %v2654 = vld [vmem:[%s2594 + $0xec] sm:$0xf]
        %v2655 = vld [vmem:[%s2594 + $0xf0] sm:$0xf]
        %v2656 = vld [vmem:[%s2594 + $0xf4] sm:$0xf]
        %v2657 = vld [vmem:[%s2594 + $0xf8] sm:$0xf]
        %v2658 = vld [vmem:[%s2594 + $0xfc] sm:$0xf]
        %v2659 = vld [vmem:[%s2594 + $0x100] sm:$0xf]
        %v2660 = vld [vmem:[%s2594 + $0x104] sm:$0xf]
        %v2661 = vld [vmem:[%s2594 + $0x108] sm:$0xf]
        %v2662 = vld [vmem:[%s2594 + $0x10c] sm:$0xf]
        %v2663 = vld [vmem:[%s2594 + $0x110] sm:$0xf]
        %v2664 = vld [vmem:[%s2594 + $0x114] sm:$0xf]
        %v2665 = vld [vmem:[%s2594 + $0x118] sm:$0xf]
        %v2666 = vld [vmem:[%s2594 + $0x11c] sm:$0xf]
        %v2667 = vld [vmem:[%s2594 + $0x120] sm:$0xf]
        %v2668 = vld [vmem:[%s2594 + $0x124] sm:$0xf]
        %v2669 = vld [vmem:[%s2594 + $0x128] sm:$0xf]
        %v2670 = vld [vmem:[%s2594 + $0x12c] sm:$0xf]
        %v2671 = vld [vmem:[%s2594 + $0x130] sm:$0xf]
        %v2672 = vld [vmem:[%s2594 + $0x134] sm:$0xf]
        %v2673 = vld [vmem:[%s2594 + $0x138] sm:$0xf]
        %v2674 = vld [vmem:[%s2594 + $0x13c] sm:$0xf]
        %s2675 = scalar_lea.vmem %s2, 4
        %v2676 = vld [vmem:[%s2675] sm:$0x1]
        %v2678 = vlaneseq
        %v2679 = vshrl.u32 %v2678, 7
        %v2680 = vsub.s32 0, %v2679
        %v2681 = vrot.slane %v2676, %v2680
        %v2763 = vunpack.c.l.b16 %v2595
        %v2764 = vunpack.c.l.b16 %v2596
        %v2765 = vunpack.c.l.b16 %v2597
        %v2766 = vunpack.c.l.b16 %v2598
        %v2767 = vunpack.c.l.b16 %v2599
        %v2768 = vunpack.c.l.b16 %v2600
        %v2769 = vunpack.c.l.b16 %v2601
        %v2770 = vunpack.c.l.b16 %v2602
        %v2771 = vunpack.c.l.b16 %v2603
        %v2772 = vunpack.c.l.b16 %v2604
        %v2773 = vunpack.c.l.b16 %v2605
        %v2774 = vunpack.c.l.b16 %v2606
        %v2775 = vunpack.c.l.b16 %v2607
        %v2776 = vunpack.c.l.b16 %v2608
        %v2777 = vunpack.c.l.b16 %v2609
        %v2778 = vunpack.c.l.b16 %v2610
        %v2779 = vunpack.c.l.b16 %v2611
        %v2780 = vunpack.c.l.b16 %v2612
        %v2781 = vunpack.c.l.b16 %v2613
        %v2782 = vunpack.c.l.b16 %v2614
        %v2783 = vunpack.c.l.b16 %v2615
        %v2784 = vunpack.c.l.b16 %v2616
        %v2785 = vunpack.c.l.b16 %v2617
        %v2786 = vunpack.c.l.b16 %v2618
        %v2787 = vunpack.c.l.b16 %v2619
        %v2788 = vunpack.c.l.b16 %v2620
        %v2789 = vunpack.c.l.b16 %v2621
        %v2790 = vunpack.c.l.b16 %v2622
        %v2791 = vunpack.c.l.b16 %v2623
        %v2792 = vunpack.c.l.b16 %v2624
        %v2793 = vunpack.c.l.b16 %v2625
        %v2794 = vunpack.c.l.b16 %v2626
        %v2795 = vunpack.c.l.b16 %v2627
        %v2796 = vunpack.c.l.b16 %v2628
        %v2797 = vunpack.c.l.b16 %v2629
        %v2798 = vunpack.c.l.b16 %v2630
        %v2799 = vunpack.c.l.b16 %v2631
        %v2800 = vunpack.c.l.b16 %v2632
        %v2801 = vunpack.c.l.b16 %v2633
        %v2802 = vunpack.c.l.b16 %v2634
        %v2803 = vunpack.c.l.b16 %v2635
        %v2804 = vunpack.c.l.b16 %v2636
        %v2805 = vunpack.c.l.b16 %v2637
        %v2806 = vunpack.c.l.b16 %v2638
        %v2807 = vunpack.c.l.b16 %v2639
        %v2808 = vunpack.c.l.b16 %v2640
        %v2809 = vunpack.c.l.b16 %v2641
        %v2810 = vunpack.c.l.b16 %v2642
        %v2811 = vunpack.c.l.b16 %v2643
        %v2812 = vunpack.c.l.b16 %v2644
        %v2813 = vunpack.c.l.b16 %v2645
        %v2814 = vunpack.c.l.b16 %v2646
        %v2815 = vunpack.c.l.b16 %v2647
        %v2816 = vunpack.c.l.b16 %v2648
        %v2817 = vunpack.c.l.b16 %v2649
        %v2818 = vunpack.c.l.b16 %v2650
        %v2819 = vunpack.c.l.b16 %v2651
        %v2820 = vunpack.c.l.b16 %v2652
        %v2821 = vunpack.c.l.b16 %v2653
        %v2822 = vunpack.c.l.b16 %v2654
        %v2823 = vunpack.c.l.b16 %v2655
        %v2824 = vunpack.c.l.b16 %v2656
        %v2825 = vunpack.c.l.b16 %v2657
        %v2826 = vunpack.c.l.b16 %v2658
        %v2827 = vunpack.c.l.b16 %v2659
        %v2828 = vunpack.c.l.b16 %v2660
        %v2829 = vunpack.c.l.b16 %v2661
        %v2830 = vunpack.c.l.b16 %v2662
        %v2831 = vunpack.c.l.b16 %v2663
        %v2832 = vunpack.c.l.b16 %v2664
        %v2833 = vunpack.c.l.b16 %v2665
        %v2834 = vunpack.c.l.b16 %v2666
        %v2835 = vunpack.c.l.b16 %v2667
        %v2836 = vunpack.c.l.b16 %v2668
        %v2837 = vunpack.c.l.b16 %v2669
        %v2838 = vunpack.c.l.b16 %v2670
        %v2839 = vunpack.c.l.b16 %v2671
        %v2840 = vunpack.c.l.b16 %v2672
        %v2841 = vunpack.c.l.b16 %v2673
        %v2842 = vunpack.c.l.b16 %v2674
        %v2843 = vpack.c.b16 %v2764, %v2763
        %v2844 = vpack.c.b16 %v2766, %v2765
        %v2845 = vpack.c.b16 %v2768, %v2767
        %v2846 = vpack.c.b16 %v2770, %v2769
        %v2847 = vpack.c.b16 %v2772, %v2771
        %v2848 = vpack.c.b16 %v2774, %v2773
        %v2849 = vpack.c.b16 %v2776, %v2775
        %v2850 = vpack.c.b16 %v2778, %v2777
        %v2851 = vpack.c.b16 %v2780, %v2779
        %v2852 = vpack.c.b16 %v2782, %v2781
        %v2853 = vpack.c.b16 %v2784, %v2783
        %v2854 = vpack.c.b16 %v2786, %v2785
        %v2855 = vpack.c.b16 %v2788, %v2787
        %v2856 = vpack.c.b16 %v2790, %v2789
        %v2857 = vpack.c.b16 %v2792, %v2791
        %v2858 = vpack.c.b16 %v2794, %v2793
        %v2859 = vpack.c.b16 %v2796, %v2795
        %v2860 = vpack.c.b16 %v2798, %v2797
        %v2861 = vpack.c.b16 %v2800, %v2799
        %v2862 = vpack.c.b16 %v2802, %v2801
        %v2863 = vpack.c.b16 %v2804, %v2803
        %v2864 = vpack.c.b16 %v2806, %v2805
        %v2865 = vpack.c.b16 %v2808, %v2807
        %v2866 = vpack.c.b16 %v2810, %v2809
        %v2867 = vpack.c.b16 %v2812, %v2811
        %v2868 = vpack.c.b16 %v2814, %v2813
        %v2869 = vpack.c.b16 %v2816, %v2815
        %v2870 = vpack.c.b16 %v2818, %v2817
        %v2871 = vpack.c.b16 %v2820, %v2819
        %v2872 = vpack.c.b16 %v2822, %v2821
        %v2873 = vpack.c.b16 %v2824, %v2823
        %v2874 = vpack.c.b16 %v2826, %v2825
        %v2875 = vpack.c.b16 %v2828, %v2827
        %v2876 = vpack.c.b16 %v2830, %v2829
        %v2877 = vpack.c.b16 %v2832, %v2831
        %v2878 = vpack.c.b16 %v2834, %v2833
        %v2879 = vpack.c.b16 %v2836, %v2835
        %v2880 = vpack.c.b16 %v2838, %v2837
        %v2881 = vpack.c.b16 %v2840, %v2839
        %v2882 = vpack.c.b16 %v2842, %v2841
        %2923 = vmatprep.subr.bf16.mxu0 0
        %2924 = vmatpush1.bf16.msra.mxu0 %v2850
        %2925 = vmatprep.subr.bf16.mxu0 0
        %2926 = vmatpush1.bf16.msra.mxu0 %v2849
        %2927 = vmatprep.subr.bf16.mxu0 0
        %2928 = vmatpush1.bf16.msra.mxu0 %v2848
        %2929 = vmatprep.subr.bf16.mxu0 0
        %2930 = vmatpush1.bf16.msra.mxu0 %v2847
        %2931 = vmatprep.subr.bf16.mxu0 0
        %2932 = vmatpush1.bf16.msra.mxu0 %v2846
        %2933 = vmatprep.subr.bf16.mxu0 0
        %2934 = vmatpush1.bf16.msra.mxu0 %v2845
        %2935 = vmatprep.subr.bf16.mxu0 0
        %2936 = vmatpush1.bf16.msra.mxu0 %v2844
        %2937 = vmatprep.subr.bf16.mxu0 0
        %2938 = vmatpush1.bf16.msra.mxu0 %v2843
        %2939 = vmatprep.subr.bf16.mxu0 0
        %2940 = vmatpush2.bf16.msra.mxu0 %v2858
        %2941 = vmatprep.subr.bf16.mxu0 0
        %2942 = vmatpush2.bf16.msra.mxu0 %v2857
        %2943 = vmatprep.subr.bf16.mxu0 0
        %2944 = vmatpush2.bf16.msra.mxu0 %v2856
        %2945 = vmatprep.subr.bf16.mxu0 0
        %2946 = vmatpush2.bf16.msra.mxu0 %v2855
        %2947 = vmatprep.subr.bf16.mxu0 0
        %2948 = vmatpush2.bf16.msra.mxu0 %v2854
        %2949 = vmatprep.subr.bf16.mxu0 0
        %2950 = vmatpush2.bf16.msra.mxu0 %v2853
        %2951 = vmatprep.subr.bf16.mxu0 0
        %2952 = vmatpush2.bf16.msra.mxu0 %v2852
        %2953 = vmatprep.subr.bf16.mxu0 0
        %2954 = vmatpush2.bf16.msra.mxu0 %v2851
        %2955 = vmatprep.mubr.bf16.mxu0 %v2570
        %2956 = vmatmul.mubr.bf16.gmra.mxu0 %v2554
        %v2957 = vpop.f32.mrf.mxu0
        %v2958 = vadd.f32 %v2681, %v2957
        %v2959 = vpop.f32.mrf.mxu0
        %v2960 = vpop.f32.mrf.mxu0
        %v2961 = vpop.f32.mrf.mxu0
        %2962 = vdwg.mxu0
        %2963 = vmatprep.subr.bf16.mxu0 0
        %2964 = vmatpush1.bf16.msra.mxu0 %v2866
        %2965 = vmatprep.subr.bf16.mxu0 0
        %2966 = vmatpush1.bf16.msra.mxu0 %v2865
        %2967 = vmatprep.subr.bf16.mxu0 0
        %2968 = vmatpush1.bf16.msra.mxu0 %v2864
        %2969 = vmatprep.subr.bf16.mxu0 0
        %2970 = vmatpush1.bf16.msra.mxu0 %v2863
        %2971 = vmatprep.subr.bf16.mxu0 0
        %2972 = vmatpush1.bf16.msra.mxu0 %v2862
        %2973 = vmatprep.subr.bf16.mxu0 0
        %2974 = vmatpush1.bf16.msra.mxu0 %v2861
        %2975 = vmatprep.subr.bf16.mxu0 0
        %2976 = vmatpush1.bf16.msra.mxu0 %v2860
        %2977 = vmatprep.subr.bf16.mxu0 0
        %2978 = vmatpush1.bf16.msra.mxu0 %v2859
        %2979 = vmatprep.subr.bf16.mxu0 0
        %2980 = vmatpush2.bf16.msra.mxu0 %v2874
        %2981 = vmatprep.subr.bf16.mxu0 0
        %2982 = vmatpush2.bf16.msra.mxu0 %v2873
        %2983 = vmatprep.subr.bf16.mxu0 0
        %2984 = vmatpush2.bf16.msra.mxu0 %v2872
        %2985 = vmatprep.subr.bf16.mxu0 0
        %2986 = vmatpush2.bf16.msra.mxu0 %v2871
        %2987 = vmatprep.subr.bf16.mxu0 0
        %2988 = vmatpush2.bf16.msra.mxu0 %v2870
        %2989 = vmatprep.subr.bf16.mxu0 0
        %2990 = vmatpush2.bf16.msra.mxu0 %v2869
        %2991 = vmatprep.subr.bf16.mxu0 0
        %2992 = vmatpush2.bf16.msra.mxu0 %v2868
        %2993 = vmatprep.subr.bf16.mxu0 0
        %2994 = vmatpush2.bf16.msra.mxu0 %v2867
        %2995 = vmatprep.mubr.bf16.mxu0 %v2587
        %2996 = vmatmul.mubr.bf16.gmra.mxu0 %v2575
        %v2997 = vpop.f32.mrf.mxu0
        %v2998 = vadd.f32 %v2958, %v2997
        %v2999 = vpop.f32.mrf.mxu0
        %v3000 = vpop.f32.mrf.mxu0
        %v3001 = vpop.f32.mrf.mxu0
        %3002 = vdwg.mxu0
        %3003 = vmatprep.subr.bf16.mxu0 0
        %3004 = vmatpush1.bf16.msra.mxu0 %v2882
        %3005 = vmatprep.subr.bf16.mxu0 0
        %3006 = vmatpush1.bf16.msra.mxu0 %v2881
        %3007 = vmatprep.subr.bf16.mxu0 0
        %3008 = vmatpush1.bf16.msra.mxu0 %v2880
        %3009 = vmatprep.subr.bf16.mxu0 0
        %3010 = vmatpush1.bf16.msra.mxu0 %v2879
        %3011 = vmatprep.subr.bf16.mxu0 0
        %3012 = vmatpush1.bf16.msra.mxu0 %v2878
        %3013 = vmatprep.subr.bf16.mxu0 0
        %3014 = vmatpush1.bf16.msra.mxu0 %v2877
        %3015 = vmatprep.subr.bf16.mxu0 0
        %3016 = vmatpush1.bf16.msra.mxu0 %v2876
        %3017 = vmatprep.subr.bf16.mxu0 0
        %3018 = vmatpush1.bf16.msra.mxu0 %v2875
        %3019 = vmatprep.subr.bf16.mxu0 0
        %3020 = vmatpush2.bf16.msra.mxu0 0
        %3021 = vmatprep.subr.bf16.mxu0 0
        %3022 = vmatpush2.bf16.msra.mxu0 0
        %3023 = vmatprep.subr.bf16.mxu0 0
        %3024 = vmatpush2.bf16.msra.mxu0 0
        %3025 = vmatprep.subr.bf16.mxu0 0
        %3026 = vmatpush2.bf16.msra.mxu0 0
        %3027 = vmatprep.subr.bf16.mxu0 0
        %3028 = vmatpush2.bf16.msra.mxu0 0
        %3029 = vmatprep.subr.bf16.mxu0 0
        %3030 = vmatpush2.bf16.msra.mxu0 0
        %3031 = vmatprep.subr.bf16.mxu0 0
        %3032 = vmatpush2.bf16.msra.mxu0 0
        %3033 = vmatprep.subr.bf16.mxu0 0
        %3034 = vmatpush2.bf16.msra.mxu0 0
        %3035 = vmatprep.mubr.bf16.mxu0 0
        %3036 = vmatmul.mubr.bf16.gmra.mxu0 %v2592
        %v3037 = vpop.f32.mrf.mxu0
        %v3038 = vadd.f32 %v2998, %v3037
        %v3039 = vpop.f32.mrf.mxu0
        %v3040 = vpop.f32.mrf.mxu0
        %v3041 = vpop.f32.mrf.mxu0
        %3042 = vdwg.mxu0
        %3043 = vst [vmem:[%s202] sm:$0xff] %v3038
        %s3044 = sand.u32 %s110, 1
        %s3045 = scalar_lea.sflag [#allocation6], %s3044
        %s3046 = sand.u32 %s110, 1
        %s3047 = smul.addr %s3046, 8
        %s3048 = scalar_lea.vmem [#allocation7], %s3047
        // Predicated region
        $region37: #{tpu_custom_call.1} parent=31 // pred_check
          %p3049 = pneg %p120
        $region38: #{tpu_custom_call.1} parent=31 // pred_check_branch
          %3051 = sbr.rel (%p3049) target = $region40
        $region39: #{tpu_custom_call.1} parent=31 // pred_region
          %s3053 = ssub.s32 128, 128
          %3054 = vsyncadd %s3045, %s3053
          %s3055 = sadd.s32 %s23, %s22
          %s3056 = smul.addr %s3055, 128
          %s3057 = scalar_lea.hbm %s3, %s3056
          %s3059 = sshll.u32 %s3048, 4
          %s3060 = int_to_ptr.vmem [resolvable:$true] %s3059
          %3062 = dma.vmem_to_hbm [thread:$0]  %s3060, 128, %s3057, %s3045
        $region40: #{tpu_custom_call.1} parent=31 // pred_fallthru
          _
      $region32: #{tpu_custom_call.1} parent=5 // pred_fallthru
        _
      %p3063 = scmp.le.s32.totalorder 2, %s13
      // Predicated region
      $region41: #{tpu_custom_call.1} parent=5 // pred_check
        %p3064 = pneg %p3063
      $region42: #{tpu_custom_call.1} parent=5 // pred_check_branch
        %3066 = sbr.rel (%p3064) target = $region44
      $region43: #{tpu_custom_call.1} parent=5 // pred_region
        %s3067 = ssub.s32 %s13, 2
        // Predicated region
        $region45: #{tpu_custom_call.1} parent=43 // pred_check
          %p3068 = pneg %p126
        $region46: #{tpu_custom_call.1} parent=43 // pred_check_branch
          %3070 = sbr.rel (%p3068) target = $region48
        $region47: #{tpu_custom_call.1} parent=43 // pred_region
          %s3071 = sand.u32 %s111, 1
          %s3072 = scalar_lea.sflag [#allocation6], %s3071
          %s3073 = sand.u32 %s111, 1
          %s3074 = smul.addr %s3073, 8
          %s3075 = scalar_lea.vmem [#allocation7], %s3074
          %3076 = dma.done %s3072, 128
        $region48: #{tpu_custom_call.1} parent=43 // pred_fallthru
          _
      $region44: #{tpu_custom_call.1} parent=5 // pred_fallthru
        _
    $region6: #{tpu_custom_call.1} parent=1 // loop_footer
      %s17 = sadd.s32 1, %s13
    $region7: #{tpu_custom_call.1} parent=1 // loop_footer_branch
      %12 = sbr.rel target = $region3
    $region8: #{tpu_custom_call.1} parent=1 // loop_exit
      _
    %3077 = vsyncpa [#allocation5], 1
    %s3078 = scalar_lea.sflag [#allocation5], 1
    %3079 = vsyncpa %s3078, 1
    %3080 = vsyncpa [#allocation6], 1
    %s3081 = scalar_lea.sflag [#allocation6], 1
    %3082 = vsyncpa %s3081, 1

</llo_original>
